<compile_context>
chip_gen: v5e
topology: v5e:2x2
jax: 0.10.0
libtpu: 0.0.40
codegen_flags: <defaults>
</compile_context>

<pallas_src>
import functools

import jax
import jax.numpy as jnp
from jax import lax
from jax.experimental import pallas as pl
from jax.experimental.pallas import tpu as pltpu

KH = KW = 3  # 3x3 convs, stride 1, padding 1


# ----------------------------------------------------------------------------
# Single fused kernel: whole network, whole batch, one invocation, all in VMEM.
# ----------------------------------------------------------------------------
def _fused_forward_kernel(x_ref, w1_ref, b1_ref, w2_ref, b2_ref,
                          wfc_ref, bfc_ref, mask_ref, pool_ref, o_ref,
                          *, B, H, W):
    # x_ref:    (Cin, N)          channel-major activations, N = B*H*W (lane-dense)
    # w1_ref:   (9, Cmid, Cin)    per-tap conv1 weights, (Cout, Cin) orientation
    # b1_ref:   (Cmid, 1)
    # w2_ref:   (9, Cmid, Cmid)   per-tap conv2 weights
    # b2_ref:   (Cmid, 1)
    # wfc_ref:  (NCLS, Cmid)      classifier weights, transposed
    # bfc_ref:  (NCLS, 1)
    # mask_ref: (9, 1, N)         border masks (zero-padding of the convs)
    # pool_ref: (N, B)            global-average-pool matrix (1/(H*W) per image)
    # o_ref:    (NCLS, B)         logits, natural orientation of this layout
    N = B * H * W

    def conv3x3_relu(act, w_ref, b_ref):
        # act: (Cin, N) -> relu(conv3x3(act) + b): (Cout, N)
        acc = None
        for kh in range(KH):
            for kw in range(KW):
                k = kh * KW + kw
                dh, dw = kh - 1, kw - 1
                # tap[p] = act[p + dh*W + dw]; positions that would cross an image
                # row / image boundary are zeroed by the precomputed mask.
                shift = (-(dh * W + dw)) % N
                tap = act if shift == 0 else pltpu.roll(act, shift=shift, axis=1)
                if dh != 0 or dw != 0:
                    tap = tap * mask_ref[k]
                contrib = jnp.dot(w_ref[k], tap,
                                  preferred_element_type=jnp.float32)
                acc = contrib if acc is None else acc + contrib
        return jnp.maximum(acc + b_ref[...], 0.0)

    h1 = conv3x3_relu(x_ref[...], w1_ref, b1_ref)        # (Cmid, N)
    h2 = conv3x3_relu(h1, w2_ref, b2_ref)                 # (Cmid, N)

    # Global average pool (matmul against constant pooling matrix) + classifier.
    pooled = jnp.dot(h2, pool_ref[...],
                     preferred_element_type=jnp.float32)  # (Cmid, B)
    logits_t = jnp.dot(wfc_ref[...], pooled,
                       preferred_element_type=jnp.float32) + bfc_ref[...]
    o_ref[...] = logits_t.astype(o_ref.dtype)             # (NCLS, B)


# ----------------------------------------------------------------------------
# Host-side constant helpers
# ----------------------------------------------------------------------------
def _shift_masks(B, H, W):
    """(9, 1, N) f32: mask[k,0,p]=1 iff pixel p shifted by (kh-1, kw-1) stays inside
    its own image (implements the conv's zero padding; also kills roll wraparound)."""
    N = B * H * W
    p = jnp.arange(N)
    hh = (p // W) % H
    ww = p % W
    rows = []
    for kh in range(KH):
        for kw in range(KW):
            dh, dw = kh - 1, kw - 1
            ok = ((hh + dh >= 0) & (hh + dh < H) &
                  (ww + dw >= 0) & (ww + dw < W))
            rows.append(ok.astype(jnp.float32))
    return jnp.stack(rows).reshape(KH * KW, 1, N)


def _pool_matrix(B, H, W):
    """(N, B) f32: pool[p, b] = 1/(H*W) iff flattened pixel p belongs to image b."""
    N = B * H * W
    img = jnp.arange(N) // (H * W)
    return (img[:, None] == jnp.arange(B)[None, :]).astype(jnp.float32) / (H * W)


# ----------------------------------------------------------------------------
# MappedModel equivalent: forward() dispatches to the wrapped model's forward.
# ----------------------------------------------------------------------------
def mapped_model_forward(x_nchw, params):
    """Equivalent of MappedModel.forward (record_activations defaults to False,
    so the output is exactly the wrapped module's forward output)."""
    # TODO(synk): activation-recording hooks / OrderedDicts of intermediates are
    # Python-side bookkeeping with no Pallas equivalent; only compute is ported.
    B, Cin, H, W = x_nchw.shape
    Cmid = params["b1"].shape[0]
    ncls = params["bfc"].shape[0]
    N = B * H * W

    # Channel-major activations: pixel axis dense on lanes.
    x_t = jnp.transpose(x_nchw, (1, 0, 2, 3)).reshape(Cin, N)
    # Per-tap weights in (Cout, Cin) orientation: w_t[kh*3+kw] = W[kh,kw].T
    w1_t = jnp.transpose(params["w1"], (0, 1, 3, 2)).reshape(KH * KW, Cmid, Cin)
    w2_t = jnp.transpose(params["w2"], (0, 1, 3, 2)).reshape(KH * KW, Cmid, Cmid)
    b1 = params["b1"].reshape(Cmid, 1)
    b2 = params["b2"].reshape(Cmid, 1)
    wfc_t = params["wfc"].T                       # (ncls, Cmid)
    bfc_t = params["bfc"].reshape(ncls, 1)
    masks = _shift_masks(B, H, W)                 # (9, 1, N)
    pool = _pool_matrix(B, H, W)                  # (N, B)

    flops = (2 * N * KH * KW * (Cin * Cmid + Cmid * Cmid)
             + 2 * Cmid * N * B + 2 * ncls * Cmid * B)
    bytes_accessed = 4 * (x_t.size + w1_t.size + w2_t.size + b1.size + b2.size
                          + wfc_t.size + bfc_t.size + masks.size + pool.size
                          + ncls * B)

    kernel = functools.partial(_fused_forward_kernel, B=B, H=H, W=W)
    out_t = pl.pallas_call(
        kernel,
        out_shape=jax.ShapeDtypeStruct((ncls, B), jnp.float32),
        grid=(1,),  # whole batch folded into a single step
        in_specs=[
            pl.BlockSpec((Cin, N), lambda i: (0, 0)),
            pl.BlockSpec((KH * KW, Cmid, Cin), lambda i: (0, 0, 0)),
            pl.BlockSpec((Cmid, 1), lambda i: (0, 0)),
            pl.BlockSpec((KH * KW, Cmid, Cmid), lambda i: (0, 0, 0)),
            pl.BlockSpec((Cmid, 1), lambda i: (0, 0)),
            pl.BlockSpec((ncls, Cmid), lambda i: (0, 0)),
            pl.BlockSpec((ncls, 1), lambda i: (0, 0)),
            pl.BlockSpec((KH * KW, 1, N), lambda i: (0, 0, 0)),
            pl.BlockSpec((N, B), lambda i: (0, 0)),
        ],
        out_specs=pl.BlockSpec((ncls, B), lambda i: (0, 0)),
        compiler_params=pltpu.CompilerParams(
            dimension_semantics=("arbitrary",)),   # sub-us step: no megacore split
        cost_estimate=pl.CostEstimate(flops=flops, transcendentals=0,
                                      bytes_accessed=bytes_accessed),
    )(x_t, w1_t, b1, w2_t, b2, wfc_t, bfc_t, masks, pool)

    # Kernel emits logits in the conv layout's natural (classes, batch) orientation
    # (a single 10x2 slab); flip back to (batch, classes) in the wrapper.
    return out_t.T


# ----------------------------------------------------------------------------
# Pure-JAX reference (correctness check for the fused Pallas kernel)
# ----------------------------------------------------------------------------
def reference_forward(x_nchw, params):
    x = jnp.transpose(x_nchw, (0, 2, 3, 1))  # NHWC
    dn = lax.conv_dimension_numbers(x.shape, params["w1"].shape,
                                    ("NHWC", "HWIO", "NHWC"))
    h = lax.conv_general_dilated(x, params["w1"], (1, 1), "SAME",
                                 dimension_numbers=dn) + params["b1"]
    h = jnp.maximum(h, 0.0)
    h = lax.conv_general_dilated(h, params["w2"], (1, 1), "SAME",
                                 dimension_numbers=dn) + params["b2"]
    h = jnp.maximum(h, 0.0)
    pooled = jnp.mean(h, axis=(1, 2))
    return pooled @ params["wfc"] + params["bfc"]


if __name__ == "__main__":
    key = jax.random.PRNGKey(0)
    kx, k1, k2, k3, k4, k5, k6 = jax.random.split(key, 7)

    B, Cin, H, W = 2, 4, 16, 16
    Cmid, NUM_CLASSES = 8, 10

    # Deterministic parameter init (HWIO conv weights for NHWC layout)
    params = {
        "w1": 0.1 * jax.random.normal(k1, (KH, KW, Cin, Cmid), jnp.float32),
        "b1": 0.1 * jax.random.normal(k2, (Cmid,), jnp.float32),
        "w2": 0.1 * jax.random.normal(k3, (KH, KW, Cmid, Cmid), jnp.float32),
        "b2": 0.1 * jax.random.normal(k4, (Cmid,), jnp.float32),
        "wfc": 0.1 * jax.random.normal(k5, (Cmid, NUM_CLASSES), jnp.float32),
        "bfc": 0.1 * jax.random.normal(k6, (NUM_CLASSES,), jnp.float32),
    }

    x = jax.random.normal(kx, (B, Cin, H, W), jnp.float32)  # NCHW, like PyTorch

    fwd = jax.jit(mapped_model_forward)
    out = jax.block_until_ready(fwd(x, params))

    ref = jax.block_until_ready(reference_forward(x, params))
    assert out.shape == (B, NUM_CLASSES)
    assert jnp.allclose(out, ref, atol=1e-4, rtol=1e-4), "mismatch vs reference"

    print("KERNEL_OK")
</pallas_src>

<mosaic_0001>
module attributes {stable_mosaic.version = 11 : i64} {
  func.func @_fused_forward_kernel(%arg0: i32, %arg1: memref<4x512xf32, #tpu.memory_space<vmem>>, %arg2: memref<9x8x4xf32, #tpu.memory_space<vmem>>, %arg3: memref<8x1xf32, #tpu.memory_space<vmem>>, %arg4: memref<9x8x8xf32, #tpu.memory_space<vmem>>, %arg5: memref<8x1xf32, #tpu.memory_space<vmem>>, %arg6: memref<10x8xf32, #tpu.memory_space<vmem>>, %arg7: memref<10x1xf32, #tpu.memory_space<vmem>>, %arg8: memref<9x1x512xf32, #tpu.memory_space<vmem>>, %arg9: memref<512x2xf32, #tpu.memory_space<vmem>>, %arg10: memref<10x2xf32, #tpu.memory_space<vmem>>) attributes {dimension_semantics = [#tpu.dimension_semantics<arbitrary>], iteration_bounds = array<i64: 1>, scalar_prefetch = 0 : i64, scratch_operands = 0 : i64, tpu.core_type = #tpu.core_type<tc>, window_params = [{pipeline_mode = #tpu.pipeline_mode<synchronous>, transform_indices = @transform_0, window_bounds = array<i64: 4, 512>}, {pipeline_mode = #tpu.pipeline_mode<synchronous>, transform_indices = @transform_1, window_bounds = array<i64: 9, 8, 4>}, {pipeline_mode = #tpu.pipeline_mode<synchronous>, transform_indices = @transform_2, window_bounds = array<i64: 8, 1>}, {pipeline_mode = #tpu.pipeline_mode<synchronous>, transform_indices = @transform_3, window_bounds = array<i64: 9, 8, 8>}, {pipeline_mode = #tpu.pipeline_mode<synchronous>, transform_indices = @transform_4, window_bounds = array<i64: 8, 1>}, {pipeline_mode = #tpu.pipeline_mode<synchronous>, transform_indices = @transform_5, window_bounds = array<i64: 10, 8>}, {pipeline_mode = #tpu.pipeline_mode<synchronous>, transform_indices = @transform_6, window_bounds = array<i64: 10, 1>}, {pipeline_mode = #tpu.pipeline_mode<synchronous>, transform_indices = @transform_7, window_bounds = array<i64: 9, 1, 512>}, {pipeline_mode = #tpu.pipeline_mode<synchronous>, transform_indices = @transform_8, window_bounds = array<i64: 512, 2>}, {pipeline_mode = #tpu.pipeline_mode<synchronous>, transform_indices = @transform_9, window_bounds = array<i64: 10, 2>}]} {
    %c0 = arith.constant 0 : index
    %c0_0 = arith.constant 0 : index
    %0 = vector.load %arg1[%c0, %c0_0] : memref<4x512xf32, #tpu.memory_space<vmem>>, vector<4x512xf32>
    %c17_i32 = arith.constant 17 : i32
    %1 = tpu.dynamic_rotate %0 by %c17_i32 dim 1 : vector<4x512xf32>, i32 -> vector<4x512xf32>
    %c0_1 = arith.constant 0 : index
    %c0_2 = arith.constant 0 : index
    %c0_3 = arith.constant 0 : index
    %2 = vector.load %arg8[%c0_1, %c0_2, %c0_3] : memref<9x1x512xf32, #tpu.memory_space<vmem>>, vector<1x1x512xf32>
    %3 = vector.shape_cast %2 : vector<1x1x512xf32> to vector<1x512xf32>
    %4 = vector.broadcast %3 : vector<1x512xf32> to vector<4x512xf32>
    %5 = arith.mulf %1, %4 : vector<4x512xf32>
    %c0_4 = arith.constant 0 : index
    %c0_5 = arith.constant 0 : index
    %c0_6 = arith.constant 0 : index
    %6 = vector.load %arg2[%c0_4, %c0_5, %c0_6] : memref<9x8x4xf32, #tpu.memory_space<vmem>>, vector<1x8x4xf32>
    %7 = vector.shape_cast %6 : vector<1x8x4xf32> to vector<8x4xf32>
    %cst = arith.constant dense<0.000000e+00> : vector<8x512xf32>
    %8 = tpu.matmul %7, %5, %cst {dimension_numbers = #tpu.dot_dimension_numbers<[1], [0], [0], [1], [0, 0, 1, 1], [], []>} : vector<8x4xf32>, vector<4x512xf32>, vector<8x512xf32> -> vector<8x512xf32>
    %c16_i32 = arith.constant 16 : i32
    %9 = tpu.dynamic_rotate %0 by %c16_i32 dim 1 : vector<4x512xf32>, i32 -> vector<4x512xf32>
    %c1 = arith.constant 1 : index
    %c0_7 = arith.constant 0 : index
    %c0_8 = arith.constant 0 : index
    %10 = vector.load %arg8[%c1, %c0_7, %c0_8] : memref<9x1x512xf32, #tpu.memory_space<vmem>>, vector<1x1x512xf32>
    %11 = vector.shape_cast %10 : vector<1x1x512xf32> to vector<1x512xf32>
    %12 = vector.broadcast %11 : vector<1x512xf32> to vector<4x512xf32>
    %13 = arith.mulf %9, %12 : vector<4x512xf32>
    %c1_9 = arith.constant 1 : index
    %c0_10 = arith.constant 0 : index
    %c0_11 = arith.constant 0 : index
    %14 = vector.load %arg2[%c1_9, %c0_10, %c0_11] : memref<9x8x4xf32, #tpu.memory_space<vmem>>, vector<1x8x4xf32>
    %15 = vector.shape_cast %14 : vector<1x8x4xf32> to vector<8x4xf32>
    %cst_12 = arith.constant dense<0.000000e+00> : vector<8x512xf32>
    %16 = tpu.matmul %15, %13, %cst_12 {dimension_numbers = #tpu.dot_dimension_numbers<[1], [0], [0], [1], [0, 0, 1, 1], [], []>} : vector<8x4xf32>, vector<4x512xf32>, vector<8x512xf32> -> vector<8x512xf32>
    %17 = arith.addf %8, %16 : vector<8x512xf32>
    %c15_i32 = arith.constant 15 : i32
    %18 = tpu.dynamic_rotate %0 by %c15_i32 dim 1 : vector<4x512xf32>, i32 -> vector<4x512xf32>
    %c2 = arith.constant 2 : index
    %c0_13 = arith.constant 0 : index
    %c0_14 = arith.constant 0 : index
    %19 = vector.load %arg8[%c2, %c0_13, %c0_14] : memref<9x1x512xf32, #tpu.memory_space<vmem>>, vector<1x1x512xf32>
    %20 = vector.shape_cast %19 : vector<1x1x512xf32> to vector<1x512xf32>
    %21 = vector.broadcast %20 : vector<1x512xf32> to vector<4x512xf32>
    %22 = arith.mulf %18, %21 : vector<4x512xf32>
    %c2_15 = arith.constant 2 : index
    %c0_16 = arith.constant 0 : index
    %c0_17 = arith.constant 0 : index
    %23 = vector.load %arg2[%c2_15, %c0_16, %c0_17] : memref<9x8x4xf32, #tpu.memory_space<vmem>>, vector<1x8x4xf32>
    %24 = vector.shape_cast %23 : vector<1x8x4xf32> to vector<8x4xf32>
    %cst_18 = arith.constant dense<0.000000e+00> : vector<8x512xf32>
    %25 = tpu.matmul %24, %22, %cst_18 {dimension_numbers = #tpu.dot_dimension_numbers<[1], [0], [0], [1], [0, 0, 1, 1], [], []>} : vector<8x4xf32>, vector<4x512xf32>, vector<8x512xf32> -> vector<8x512xf32>
    %26 = arith.addf %17, %25 : vector<8x512xf32>
    %c1_i32 = arith.constant 1 : i32
    %27 = tpu.dynamic_rotate %0 by %c1_i32 dim 1 : vector<4x512xf32>, i32 -> vector<4x512xf32>
    %c3 = arith.constant 3 : index
    %c0_19 = arith.constant 0 : index
    %c0_20 = arith.constant 0 : index
    %28 = vector.load %arg8[%c3, %c0_19, %c0_20] : memref<9x1x512xf32, #tpu.memory_space<vmem>>, vector<1x1x512xf32>
    %29 = vector.shape_cast %28 : vector<1x1x512xf32> to vector<1x512xf32>
    %30 = vector.broadcast %29 : vector<1x512xf32> to vector<4x512xf32>
    %31 = arith.mulf %27, %30 : vector<4x512xf32>
    %c3_21 = arith.constant 3 : index
    %c0_22 = arith.constant 0 : index
    %c0_23 = arith.constant 0 : index
    %32 = vector.load %arg2[%c3_21, %c0_22, %c0_23] : memref<9x8x4xf32, #tpu.memory_space<vmem>>, vector<1x8x4xf32>
    %33 = vector.shape_cast %32 : vector<1x8x4xf32> to vector<8x4xf32>
    %cst_24 = arith.constant dense<0.000000e+00> : vector<8x512xf32>
    %34 = tpu.matmul %33, %31, %cst_24 {dimension_numbers = #tpu.dot_dimension_numbers<[1], [0], [0], [1], [0, 0, 1, 1], [], []>} : vector<8x4xf32>, vector<4x512xf32>, vector<8x512xf32> -> vector<8x512xf32>
    %35 = arith.addf %26, %34 : vector<8x512xf32>
    %c4 = arith.constant 4 : index
    %c0_25 = arith.constant 0 : index
    %c0_26 = arith.constant 0 : index
    %36 = vector.load %arg2[%c4, %c0_25, %c0_26] : memref<9x8x4xf32, #tpu.memory_space<vmem>>, vector<1x8x4xf32>
    %37 = vector.shape_cast %36 : vector<1x8x4xf32> to vector<8x4xf32>
    %cst_27 = arith.constant dense<0.000000e+00> : vector<8x512xf32>
    %38 = tpu.matmul %37, %0, %cst_27 {dimension_numbers = #tpu.dot_dimension_numbers<[1], [0], [0], [1], [0, 0, 1, 1], [], []>} : vector<8x4xf32>, vector<4x512xf32>, vector<8x512xf32> -> vector<8x512xf32>
    %39 = arith.addf %35, %38 : vector<8x512xf32>
    %c511_i32 = arith.constant 511 : i32
    %40 = tpu.dynamic_rotate %0 by %c511_i32 dim 1 : vector<4x512xf32>, i32 -> vector<4x512xf32>
    %c5 = arith.constant 5 : index
    %c0_28 = arith.constant 0 : index
    %c0_29 = arith.constant 0 : index
    %41 = vector.load %arg8[%c5, %c0_28, %c0_29] : memref<9x1x512xf32, #tpu.memory_space<vmem>>, vector<1x1x512xf32>
    %42 = vector.shape_cast %41 : vector<1x1x512xf32> to vector<1x512xf32>
    %43 = vector.broadcast %42 : vector<1x512xf32> to vector<4x512xf32>
    %44 = arith.mulf %40, %43 : vector<4x512xf32>
    %c5_30 = arith.constant 5 : index
    %c0_31 = arith.constant 0 : index
    %c0_32 = arith.constant 0 : index
    %45 = vector.load %arg2[%c5_30, %c0_31, %c0_32] : memref<9x8x4xf32, #tpu.memory_space<vmem>>, vector<1x8x4xf32>
    %46 = vector.shape_cast %45 : vector<1x8x4xf32> to vector<8x4xf32>
    %cst_33 = arith.constant dense<0.000000e+00> : vector<8x512xf32>
    %47 = tpu.matmul %46, %44, %cst_33 {dimension_numbers = #tpu.dot_dimension_numbers<[1], [0], [0], [1], [0, 0, 1, 1], [], []>} : vector<8x4xf32>, vector<4x512xf32>, vector<8x512xf32> -> vector<8x512xf32>
    %48 = arith.addf %39, %47 : vector<8x512xf32>
    %c497_i32 = arith.constant 497 : i32
    %49 = tpu.dynamic_rotate %0 by %c497_i32 dim 1 : vector<4x512xf32>, i32 -> vector<4x512xf32>
    %c6 = arith.constant 6 : index
    %c0_34 = arith.constant 0 : index
    %c0_35 = arith.constant 0 : index
    %50 = vector.load %arg8[%c6, %c0_34, %c0_35] : memref<9x1x512xf32, #tpu.memory_space<vmem>>, vector<1x1x512xf32>
    %51 = vector.shape_cast %50 : vector<1x1x512xf32> to vector<1x512xf32>
    %52 = vector.broadcast %51 : vector<1x512xf32> to vector<4x512xf32>
    %53 = arith.mulf %49, %52 : vector<4x512xf32>
    %c6_36 = arith.constant 6 : index
    %c0_37 = arith.constant 0 : index
    %c0_38 = arith.constant 0 : index
    %54 = vector.load %arg2[%c6_36, %c0_37, %c0_38] : memref<9x8x4xf32, #tpu.memory_space<vmem>>, vector<1x8x4xf32>
    %55 = vector.shape_cast %54 : vector<1x8x4xf32> to vector<8x4xf32>
    %cst_39 = arith.constant dense<0.000000e+00> : vector<8x512xf32>
    %56 = tpu.matmul %55, %53, %cst_39 {dimension_numbers = #tpu.dot_dimension_numbers<[1], [0], [0], [1], [0, 0, 1, 1], [], []>} : vector<8x4xf32>, vector<4x512xf32>, vector<8x512xf32> -> vector<8x512xf32>
    %57 = arith.addf %48, %56 : vector<8x512xf32>
    %c496_i32 = arith.constant 496 : i32
    %58 = tpu.dynamic_rotate %0 by %c496_i32 dim 1 : vector<4x512xf32>, i32 -> vector<4x512xf32>
    %c7 = arith.constant 7 : index
    %c0_40 = arith.constant 0 : index
    %c0_41 = arith.constant 0 : index
    %59 = vector.load %arg8[%c7, %c0_40, %c0_41] : memref<9x1x512xf32, #tpu.memory_space<vmem>>, vector<1x1x512xf32>
    %60 = vector.shape_cast %59 : vector<1x1x512xf32> to vector<1x512xf32>
    %61 = vector.broadcast %60 : vector<1x512xf32> to vector<4x512xf32>
    %62 = arith.mulf %58, %61 : vector<4x512xf32>
    %c7_42 = arith.constant 7 : index
    %c0_43 = arith.constant 0 : index
    %c0_44 = arith.constant 0 : index
    %63 = vector.load %arg2[%c7_42, %c0_43, %c0_44] : memref<9x8x4xf32, #tpu.memory_space<vmem>>, vector<1x8x4xf32>
    %64 = vector.shape_cast %63 : vector<1x8x4xf32> to vector<8x4xf32>
    %cst_45 = arith.constant dense<0.000000e+00> : vector<8x512xf32>
    %65 = tpu.matmul %64, %62, %cst_45 {dimension_numbers = #tpu.dot_dimension_numbers<[1], [0], [0], [1], [0, 0, 1, 1], [], []>} : vector<8x4xf32>, vector<4x512xf32>, vector<8x512xf32> -> vector<8x512xf32>
    %66 = arith.addf %57, %65 : vector<8x512xf32>
    %c495_i32 = arith.constant 495 : i32
    %67 = tpu.dynamic_rotate %0 by %c495_i32 dim 1 : vector<4x512xf32>, i32 -> vector<4x512xf32>
    %c8 = arith.constant 8 : index
    %c0_46 = arith.constant 0 : index
    %c0_47 = arith.constant 0 : index
    %68 = vector.load %arg8[%c8, %c0_46, %c0_47] : memref<9x1x512xf32, #tpu.memory_space<vmem>>, vector<1x1x512xf32>
    %69 = vector.shape_cast %68 : vector<1x1x512xf32> to vector<1x512xf32>
    %70 = vector.broadcast %69 : vector<1x512xf32> to vector<4x512xf32>
    %71 = arith.mulf %67, %70 : vector<4x512xf32>
    %c8_48 = arith.constant 8 : index
    %c0_49 = arith.constant 0 : index
    %c0_50 = arith.constant 0 : index
    %72 = vector.load %arg2[%c8_48, %c0_49, %c0_50] : memref<9x8x4xf32, #tpu.memory_space<vmem>>, vector<1x8x4xf32>
    %73 = vector.shape_cast %72 : vector<1x8x4xf32> to vector<8x4xf32>
    %cst_51 = arith.constant dense<0.000000e+00> : vector<8x512xf32>
    %74 = tpu.matmul %73, %71, %cst_51 {dimension_numbers = #tpu.dot_dimension_numbers<[1], [0], [0], [1], [0, 0, 1, 1], [], []>} : vector<8x4xf32>, vector<4x512xf32>, vector<8x512xf32> -> vector<8x512xf32>
    %75 = arith.addf %66, %74 : vector<8x512xf32>
    %c0_52 = arith.constant 0 : index
    %c0_53 = arith.constant 0 : index
    %76 = vector.load %arg3[%c0_52, %c0_53] : memref<8x1xf32, #tpu.memory_space<vmem>>, vector<8x1xf32>
    %77 = vector.broadcast %76 : vector<8x1xf32> to vector<8x512xf32>
    %78 = arith.addf %75, %77 : vector<8x512xf32>
    %cst_54 = arith.constant 0.000000e+00 : f32
    %79 = vector.broadcast %cst_54 : f32 to vector<8x512xf32>
    %80 = arith.maximumf %78, %79 : vector<8x512xf32>
    %c17_i32_55 = arith.constant 17 : i32
    %81 = tpu.dynamic_rotate %80 by %c17_i32_55 dim 1 : vector<8x512xf32>, i32 -> vector<8x512xf32>
    %c0_56 = arith.constant 0 : index
    %c0_57 = arith.constant 0 : index
    %c0_58 = arith.constant 0 : index
    %82 = vector.load %arg8[%c0_56, %c0_57, %c0_58] : memref<9x1x512xf32, #tpu.memory_space<vmem>>, vector<1x1x512xf32>
    %83 = vector.shape_cast %82 : vector<1x1x512xf32> to vector<1x512xf32>
    %84 = vector.broadcast %83 : vector<1x512xf32> to vector<8x512xf32>
    %85 = arith.mulf %81, %84 : vector<8x512xf32>
    %c0_59 = arith.constant 0 : index
    %c0_60 = arith.constant 0 : index
    %c0_61 = arith.constant 0 : index
    %86 = vector.load %arg4[%c0_59, %c0_60, %c0_61] : memref<9x8x8xf32, #tpu.memory_space<vmem>>, vector<1x8x8xf32>
    %87 = vector.shape_cast %86 : vector<1x8x8xf32> to vector<8x8xf32>
    %cst_62 = arith.constant dense<0.000000e+00> : vector<8x512xf32>
    %88 = tpu.matmul %87, %85, %cst_62 {dimension_numbers = #tpu.dot_dimension_numbers<[1], [0], [0], [1], [0, 0, 1, 1], [], []>} : vector<8x8xf32>, vector<8x512xf32>, vector<8x512xf32> -> vector<8x512xf32>
    %c16_i32_63 = arith.constant 16 : i32
    %89 = tpu.dynamic_rotate %80 by %c16_i32_63 dim 1 : vector<8x512xf32>, i32 -> vector<8x512xf32>
    %c1_64 = arith.constant 1 : index
    %c0_65 = arith.constant 0 : index
    %c0_66 = arith.constant 0 : index
    %90 = vector.load %arg8[%c1_64, %c0_65, %c0_66] : memref<9x1x512xf32, #tpu.memory_space<vmem>>, vector<1x1x512xf32>
    %91 = vector.shape_cast %90 : vector<1x1x512xf32> to vector<1x512xf32>
    %92 = vector.broadcast %91 : vector<1x512xf32> to vector<8x512xf32>
    %93 = arith.mulf %89, %92 : vector<8x512xf32>
    %c1_67 = arith.constant 1 : index
    %c0_68 = arith.constant 0 : index
    %c0_69 = arith.constant 0 : index
    %94 = vector.load %arg4[%c1_67, %c0_68, %c0_69] : memref<9x8x8xf32, #tpu.memory_space<vmem>>, vector<1x8x8xf32>
    %95 = vector.shape_cast %94 : vector<1x8x8xf32> to vector<8x8xf32>
    %cst_70 = arith.constant dense<0.000000e+00> : vector<8x512xf32>
    %96 = tpu.matmul %95, %93, %cst_70 {dimension_numbers = #tpu.dot_dimension_numbers<[1], [0], [0], [1], [0, 0, 1, 1], [], []>} : vector<8x8xf32>, vector<8x512xf32>, vector<8x512xf32> -> vector<8x512xf32>
    %97 = arith.addf %88, %96 : vector<8x512xf32>
    %c15_i32_71 = arith.constant 15 : i32
    %98 = tpu.dynamic_rotate %80 by %c15_i32_71 dim 1 : vector<8x512xf32>, i32 -> vector<8x512xf32>
    %c2_72 = arith.constant 2 : index
    %c0_73 = arith.constant 0 : index
    %c0_74 = arith.constant 0 : index
    %99 = vector.load %arg8[%c2_72, %c0_73, %c0_74] : memref<9x1x512xf32, #tpu.memory_space<vmem>>, vector<1x1x512xf32>
    %100 = vector.shape_cast %99 : vector<1x1x512xf32> to vector<1x512xf32>
    %101 = vector.broadcast %100 : vector<1x512xf32> to vector<8x512xf32>
    %102 = arith.mulf %98, %101 : vector<8x512xf32>
    %c2_75 = arith.constant 2 : index
    %c0_76 = arith.constant 0 : index
    %c0_77 = arith.constant 0 : index
    %103 = vector.load %arg4[%c2_75, %c0_76, %c0_77] : memref<9x8x8xf32, #tpu.memory_space<vmem>>, vector<1x8x8xf32>
    %104 = vector.shape_cast %103 : vector<1x8x8xf32> to vector<8x8xf32>
    %cst_78 = arith.constant dense<0.000000e+00> : vector<8x512xf32>
    %105 = tpu.matmul %104, %102, %cst_78 {dimension_numbers = #tpu.dot_dimension_numbers<[1], [0], [0], [1], [0, 0, 1, 1], [], []>} : vector<8x8xf32>, vector<8x512xf32>, vector<8x512xf32> -> vector<8x512xf32>
    %106 = arith.addf %97, %105 : vector<8x512xf32>
    %c1_i32_79 = arith.constant 1 : i32
    %107 = tpu.dynamic_rotate %80 by %c1_i32_79 dim 1 : vector<8x512xf32>, i32 -> vector<8x512xf32>
    %c3_80 = arith.constant 3 : index
    %c0_81 = arith.constant 0 : index
    %c0_82 = arith.constant 0 : index
    %108 = vector.load %arg8[%c3_80, %c0_81, %c0_82] : memref<9x1x512xf32, #tpu.memory_space<vmem>>, vector<1x1x512xf32>
    %109 = vector.shape_cast %108 : vector<1x1x512xf32> to vector<1x512xf32>
    %110 = vector.broadcast %109 : vector<1x512xf32> to vector<8x512xf32>
    %111 = arith.mulf %107, %110 : vector<8x512xf32>
    %c3_83 = arith.constant 3 : index
    %c0_84 = arith.constant 0 : index
    %c0_85 = arith.constant 0 : index
    %112 = vector.load %arg4[%c3_83, %c0_84, %c0_85] : memref<9x8x8xf32, #tpu.memory_space<vmem>>, vector<1x8x8xf32>
    %113 = vector.shape_cast %112 : vector<1x8x8xf32> to vector<8x8xf32>
    %cst_86 = arith.constant dense<0.000000e+00> : vector<8x512xf32>
    %114 = tpu.matmul %113, %111, %cst_86 {dimension_numbers = #tpu.dot_dimension_numbers<[1], [0], [0], [1], [0, 0, 1, 1], [], []>} : vector<8x8xf32>, vector<8x512xf32>, vector<8x512xf32> -> vector<8x512xf32>
    %115 = arith.addf %106, %114 : vector<8x512xf32>
    %c4_87 = arith.constant 4 : index
    %c0_88 = arith.constant 0 : index
    %c0_89 = arith.constant 0 : index
    %116 = vector.load %arg4[%c4_87, %c0_88, %c0_89] : memref<9x8x8xf32, #tpu.memory_space<vmem>>, vector<1x8x8xf32>
    %117 = vector.shape_cast %116 : vector<1x8x8xf32> to vector<8x8xf32>
    %cst_90 = arith.constant dense<0.000000e+00> : vector<8x512xf32>
    %118 = tpu.matmul %117, %80, %cst_90 {dimension_numbers = #tpu.dot_dimension_numbers<[1], [0], [0], [1], [0, 0, 1, 1], [], []>} : vector<8x8xf32>, vector<8x512xf32>, vector<8x512xf32> -> vector<8x512xf32>
    %119 = arith.addf %115, %118 : vector<8x512xf32>
    %c511_i32_91 = arith.constant 511 : i32
    %120 = tpu.dynamic_rotate %80 by %c511_i32_91 dim 1 : vector<8x512xf32>, i32 -> vector<8x512xf32>
    %c5_92 = arith.constant 5 : index
    %c0_93 = arith.constant 0 : index
    %c0_94 = arith.constant 0 : index
    %121 = vector.load %arg8[%c5_92, %c0_93, %c0_94] : memref<9x1x512xf32, #tpu.memory_space<vmem>>, vector<1x1x512xf32>
    %122 = vector.shape_cast %121 : vector<1x1x512xf32> to vector<1x512xf32>
    %123 = vector.broadcast %122 : vector<1x512xf32> to vector<8x512xf32>
    %124 = arith.mulf %120, %123 : vector<8x512xf32>
    %c5_95 = arith.constant 5 : index
    %c0_96 = arith.constant 0 : index
    %c0_97 = arith.constant 0 : index
    %125 = vector.load %arg4[%c5_95, %c0_96, %c0_97] : memref<9x8x8xf32, #tpu.memory_space<vmem>>, vector<1x8x8xf32>
    %126 = vector.shape_cast %125 : vector<1x8x8xf32> to vector<8x8xf32>
    %cst_98 = arith.constant dense<0.000000e+00> : vector<8x512xf32>
    %127 = tpu.matmul %126, %124, %cst_98 {dimension_numbers = #tpu.dot_dimension_numbers<[1], [0], [0], [1], [0, 0, 1, 1], [], []>} : vector<8x8xf32>, vector<8x512xf32>, vector<8x512xf32> -> vector<8x512xf32>
    %128 = arith.addf %119, %127 : vector<8x512xf32>
    %c497_i32_99 = arith.constant 497 : i32
    %129 = tpu.dynamic_rotate %80 by %c497_i32_99 dim 1 : vector<8x512xf32>, i32 -> vector<8x512xf32>
    %c6_100 = arith.constant 6 : index
    %c0_101 = arith.constant 0 : index
    %c0_102 = arith.constant 0 : index
    %130 = vector.load %arg8[%c6_100, %c0_101, %c0_102] : memref<9x1x512xf32, #tpu.memory_space<vmem>>, vector<1x1x512xf32>
    %131 = vector.shape_cast %130 : vector<1x1x512xf32> to vector<1x512xf32>
    %132 = vector.broadcast %131 : vector<1x512xf32> to vector<8x512xf32>
    %133 = arith.mulf %129, %132 : vector<8x512xf32>
    %c6_103 = arith.constant 6 : index
    %c0_104 = arith.constant 0 : index
    %c0_105 = arith.constant 0 : index
    %134 = vector.load %arg4[%c6_103, %c0_104, %c0_105] : memref<9x8x8xf32, #tpu.memory_space<vmem>>, vector<1x8x8xf32>
    %135 = vector.shape_cast %134 : vector<1x8x8xf32> to vector<8x8xf32>
    %cst_106 = arith.constant dense<0.000000e+00> : vector<8x512xf32>
    %136 = tpu.matmul %135, %133, %cst_106 {dimension_numbers = #tpu.dot_dimension_numbers<[1], [0], [0], [1], [0, 0, 1, 1], [], []>} : vector<8x8xf32>, vector<8x512xf32>, vector<8x512xf32> -> vector<8x512xf32>
    %137 = arith.addf %128, %136 : vector<8x512xf32>
    %c496_i32_107 = arith.constant 496 : i32
    %138 = tpu.dynamic_rotate %80 by %c496_i32_107 dim 1 : vector<8x512xf32>, i32 -> vector<8x512xf32>
    %c7_108 = arith.constant 7 : index
    %c0_109 = arith.constant 0 : index
    %c0_110 = arith.constant 0 : index
    %139 = vector.load %arg8[%c7_108, %c0_109, %c0_110] : memref<9x1x512xf32, #tpu.memory_space<vmem>>, vector<1x1x512xf32>
    %140 = vector.shape_cast %139 : vector<1x1x512xf32> to vector<1x512xf32>
    %141 = vector.broadcast %140 : vector<1x512xf32> to vector<8x512xf32>
    %142 = arith.mulf %138, %141 : vector<8x512xf32>
    %c7_111 = arith.constant 7 : index
    %c0_112 = arith.constant 0 : index
    %c0_113 = arith.constant 0 : index
    %143 = vector.load %arg4[%c7_111, %c0_112, %c0_113] : memref<9x8x8xf32, #tpu.memory_space<vmem>>, vector<1x8x8xf32>
    %144 = vector.shape_cast %143 : vector<1x8x8xf32> to vector<8x8xf32>
    %cst_114 = arith.constant dense<0.000000e+00> : vector<8x512xf32>
    %145 = tpu.matmul %144, %142, %cst_114 {dimension_numbers = #tpu.dot_dimension_numbers<[1], [0], [0], [1], [0, 0, 1, 1], [], []>} : vector<8x8xf32>, vector<8x512xf32>, vector<8x512xf32> -> vector<8x512xf32>
    %146 = arith.addf %137, %145 : vector<8x512xf32>
    %c495_i32_115 = arith.constant 495 : i32
    %147 = tpu.dynamic_rotate %80 by %c495_i32_115 dim 1 : vector<8x512xf32>, i32 -> vector<8x512xf32>
    %c8_116 = arith.constant 8 : index
    %c0_117 = arith.constant 0 : index
    %c0_118 = arith.constant 0 : index
    %148 = vector.load %arg8[%c8_116, %c0_117, %c0_118] : memref<9x1x512xf32, #tpu.memory_space<vmem>>, vector<1x1x512xf32>
    %149 = vector.shape_cast %148 : vector<1x1x512xf32> to vector<1x512xf32>
    %150 = vector.broadcast %149 : vector<1x512xf32> to vector<8x512xf32>
    %151 = arith.mulf %147, %150 : vector<8x512xf32>
    %c8_119 = arith.constant 8 : index
    %c0_120 = arith.constant 0 : index
    %c0_121 = arith.constant 0 : index
    %152 = vector.load %arg4[%c8_119, %c0_120, %c0_121] : memref<9x8x8xf32, #tpu.memory_space<vmem>>, vector<1x8x8xf32>
    %153 = vector.shape_cast %152 : vector<1x8x8xf32> to vector<8x8xf32>
    %cst_122 = arith.constant dense<0.000000e+00> : vector<8x512xf32>
    %154 = tpu.matmul %153, %151, %cst_122 {dimension_numbers = #tpu.dot_dimension_numbers<[1], [0], [0], [1], [0, 0, 1, 1], [], []>} : vector<8x8xf32>, vector<8x512xf32>, vector<8x512xf32> -> vector<8x512xf32>
    %155 = arith.addf %146, %154 : vector<8x512xf32>
    %c0_123 = arith.constant 0 : index
    %c0_124 = arith.constant 0 : index
    %156 = vector.load %arg5[%c0_123, %c0_124] : memref<8x1xf32, #tpu.memory_space<vmem>>, vector<8x1xf32>
    %157 = vector.broadcast %156 : vector<8x1xf32> to vector<8x512xf32>
    %158 = arith.addf %155, %157 : vector<8x512xf32>
    %cst_125 = arith.constant 0.000000e+00 : f32
    %159 = vector.broadcast %cst_125 : f32 to vector<8x512xf32>
    %160 = arith.maximumf %158, %159 : vector<8x512xf32>
    %c0_126 = arith.constant 0 : index
    %c0_127 = arith.constant 0 : index
    %161 = vector.load %arg9[%c0_126, %c0_127] : memref<512x2xf32, #tpu.memory_space<vmem>>, vector<512x2xf32>
    %cst_128 = arith.constant dense<0.000000e+00> : vector<8x2xf32>
    %162 = tpu.matmul %160, %161, %cst_128 {dimension_numbers = #tpu.dot_dimension_numbers<[1], [0], [0], [1], [0, 0, 1, 1], [], []>} : vector<8x512xf32>, vector<512x2xf32>, vector<8x2xf32> -> vector<8x2xf32>
    %c0_129 = arith.constant 0 : index
    %c0_130 = arith.constant 0 : index
    %163 = vector.load %arg6[%c0_129, %c0_130] : memref<10x8xf32, #tpu.memory_space<vmem>>, vector<10x8xf32>
    %cst_131 = arith.constant dense<0.000000e+00> : vector<10x2xf32>
    %164 = tpu.matmul %163, %162, %cst_131 {dimension_numbers = #tpu.dot_dimension_numbers<[1], [0], [0], [1], [0, 0, 1, 1], [], []>} : vector<10x8xf32>, vector<8x2xf32>, vector<10x2xf32> -> vector<10x2xf32>
    %c0_132 = arith.constant 0 : index
    %c0_133 = arith.constant 0 : index
    %165 = vector.load %arg7[%c0_132, %c0_133] : memref<10x1xf32, #tpu.memory_space<vmem>>, vector<10x1xf32>
    %166 = vector.broadcast %165 : vector<10x1xf32> to vector<10x2xf32>
    %167 = arith.addf %164, %166 : vector<10x2xf32>
    %c0_134 = arith.constant 0 : index
    %c0_135 = arith.constant 0 : index
    %168 = vector.load %arg10[%c0_134, %c0_135] : memref<10x2xf32, #tpu.memory_space<vmem>>, vector<10x2xf32>
    tpu.vector_store %arg10[%c0_134, %c0_135], %167 {strides = array<i32>} : memref<10x2xf32, #tpu.memory_space<vmem>>, vector<10x2xf32>,
    return
  }
  func.func @transform_0(%arg0: i32) -> (i32, i32) {
    %c0_i32 = arith.constant 0 : i32
    %c0_i32_0 = arith.constant 0 : i32
    %c0_i32_1 = arith.constant 0 : i32
    return %c0_i32, %c0_i32_0 : i32, i32
  }
  func.func @transform_1(%arg0: i32) -> (i32, i32, i32) {
    %c0_i32 = arith.constant 0 : i32
    %c0_i32_0 = arith.constant 0 : i32
    %c0_i32_1 = arith.constant 0 : i32
    %c0_i32_2 = arith.constant 0 : i32
    return %c0_i32, %c0_i32_0, %c0_i32_1 : i32, i32, i32
  }
  func.func @transform_2(%arg0: i32) -> (i32, i32) {
    %c0_i32 = arith.constant 0 : i32
    %c0_i32_0 = arith.constant 0 : i32
    %c0_i32_1 = arith.constant 0 : i32
    return %c0_i32, %c0_i32_0 : i32, i32
  }
  func.func @transform_3(%arg0: i32) -> (i32, i32, i32) {
    %c0_i32 = arith.constant 0 : i32
    %c0_i32_0 = arith.constant 0 : i32
    %c0_i32_1 = arith.constant 0 : i32
    %c0_i32_2 = arith.constant 0 : i32
    return %c0_i32, %c0_i32_0, %c0_i32_1 : i32, i32, i32
  }
  func.func @transform_4(%arg0: i32) -> (i32, i32) {
    %c0_i32 = arith.constant 0 : i32
    %c0_i32_0 = arith.constant 0 : i32
    %c0_i32_1 = arith.constant 0 : i32
    return %c0_i32, %c0_i32_0 : i32, i32
  }
  func.func @transform_5(%arg0: i32) -> (i32, i32) {
    %c0_i32 = arith.constant 0 : i32
    %c0_i32_0 = arith.constant 0 : i32
    %c0_i32_1 = arith.constant 0 : i32
    return %c0_i32, %c0_i32_0 : i32, i32
  }
  func.func @transform_6(%arg0: i32) -> (i32, i32) {
    %c0_i32 = arith.constant 0 : i32
    %c0_i32_0 = arith.constant 0 : i32
    %c0_i32_1 = arith.constant 0 : i32
    return %c0_i32, %c0_i32_0 : i32, i32
  }
  func.func @transform_7(%arg0: i32) -> (i32, i32, i32) {
    %c0_i32 = arith.constant 0 : i32
    %c0_i32_0 = arith.constant 0 : i32
    %c0_i32_1 = arith.constant 0 : i32
    %c0_i32_2 = arith.constant 0 : i32
    return %c0_i32, %c0_i32_0, %c0_i32_1 : i32, i32, i32
  }
  func.func @transform_8(%arg0: i32) -> (i32, i32) {
    %c0_i32 = arith.constant 0 : i32
    %c0_i32_0 = arith.constant 0 : i32
    %c0_i32_1 = arith.constant 0 : i32
    return %c0_i32, %c0_i32_0 : i32, i32
  }
  func.func @transform_9(%arg0: i32) -> (i32, i32) {
    %c0_i32 = arith.constant 0 : i32
    %c0_i32_0 = arith.constant 0 : i32
    %c0_i32_1 = arith.constant 0 : i32
    return %c0_i32, %c0_i32_0 : i32, i32
  }
}

</mosaic_0001>

<llo_original>
// kernel: mapped_model_forward.1
$region0: #{mapped_model_forward.1}
  #allocation0 [shape = 'u32[]', space=smem, size = 0x4, offset = 0x4, fixed_abs, tag = 'smem constant byte address 0x4 - core index']
  #allocation1 [shape = 'u32[72,128]{1,0:T(1,128)}', space=vmem, size = 0x9000, scoped, tag = 'internal scratch']
  %s0 = inlined_call_operand.vmem [shape: f32[4,512], index: 0, kind: input, shape index: {}]
  %s1 = inlined_call_operand.vmem [shape: f32[9,8,4], index: 1, kind: input, shape index: {}]
  %s2 = inlined_call_operand.vmem [shape: f32[8,1], index: 2, kind: input, shape index: {}]
  %s3 = inlined_call_operand.vmem [shape: f32[9,8,8], index: 3, kind: input, shape index: {}]
  %s4 = inlined_call_operand.vmem [shape: f32[8,1], index: 4, kind: input, shape index: {}]
  %s5 = inlined_call_operand.vmem [shape: f32[10,8], index: 5, kind: input, shape index: {}]
  %s6 = inlined_call_operand.vmem [shape: f32[10,1], index: 6, kind: input, shape index: {}]
  %s7 = inlined_call_operand.vmem [shape: f32[9,1,512], index: 7, kind: input, shape index: {}]
  %s8 = inlined_call_operand.vmem [shape: f32[512,2], index: 8, kind: input, shape index: {}]
  %s9 = inlined_call_operand.vmem [shape: f32[10,2], index: 9, kind: output, shape index: {}]
  %s10 = sld [smem:[#allocation0]]
  $region46: #{mapped_model_forward.1} parent=0
    _
  %s12 = ssub.s32 1, %s10
  %s13 = scalar_select 0, %s12, %s10
  // Predicated region
  $region2: #{mapped_model_forward.1} parent=0 // pred_check
    _
  $region3: #{mapped_model_forward.1} parent=0 // pred_check_branch
    %15 = sbr.rel (0) target = $region5
  $region4: #{mapped_model_forward.1} parent=0 // pred_region
    _
  $region5: #{mapped_model_forward.1} parent=0 // pred_fallthru
    _
  // Predicated region
  $region6: #{mapped_model_forward.1} parent=0 // pred_check
    _
  $region7: #{mapped_model_forward.1} parent=0 // pred_check_branch
    %17 = sbr.rel (0) target = $region9
  $region8: #{mapped_model_forward.1} parent=0 // pred_region
    _
  $region9: #{mapped_model_forward.1} parent=0 // pred_fallthru
    _
  // Predicated region
  $region10: #{mapped_model_forward.1} parent=0 // pred_check
    _
  $region11: #{mapped_model_forward.1} parent=0 // pred_check_branch
    %19 = sbr.rel (0) target = $region13
  $region12: #{mapped_model_forward.1} parent=0 // pred_region
    _
  $region13: #{mapped_model_forward.1} parent=0 // pred_fallthru
    _
  // Predicated region
  $region14: #{mapped_model_forward.1} parent=0 // pred_check
    _
  $region15: #{mapped_model_forward.1} parent=0 // pred_check_branch
    %21 = sbr.rel (0) target = $region17
  $region16: #{mapped_model_forward.1} parent=0 // pred_region
    _
  $region17: #{mapped_model_forward.1} parent=0 // pred_fallthru
    _
  // Predicated region
  $region18: #{mapped_model_forward.1} parent=0 // pred_check
    _
  $region19: #{mapped_model_forward.1} parent=0 // pred_check_branch
    %23 = sbr.rel (0) target = $region21
  $region20: #{mapped_model_forward.1} parent=0 // pred_region
    _
  $region21: #{mapped_model_forward.1} parent=0 // pred_fallthru
    _
  // Predicated region
  $region22: #{mapped_model_forward.1} parent=0 // pred_check
    _
  $region23: #{mapped_model_forward.1} parent=0 // pred_check_branch
    %25 = sbr.rel (0) target = $region25
  $region24: #{mapped_model_forward.1} parent=0 // pred_region
    _
  $region25: #{mapped_model_forward.1} parent=0 // pred_fallthru
    _
  // Predicated region
  $region26: #{mapped_model_forward.1} parent=0 // pred_check
    _
  $region27: #{mapped_model_forward.1} parent=0 // pred_check_branch
    %27 = sbr.rel (0) target = $region29
  $region28: #{mapped_model_forward.1} parent=0 // pred_region
    _
  $region29: #{mapped_model_forward.1} parent=0 // pred_fallthru
    _
  // Predicated region
  $region30: #{mapped_model_forward.1} parent=0 // pred_check
    _
  $region31: #{mapped_model_forward.1} parent=0 // pred_check_branch
    %29 = sbr.rel (0) target = $region33
  $region32: #{mapped_model_forward.1} parent=0 // pred_region
    _
  $region33: #{mapped_model_forward.1} parent=0 // pred_fallthru
    _
  // Predicated region
  $region34: #{mapped_model_forward.1} parent=0 // pred_check
    _
  $region35: #{mapped_model_forward.1} parent=0 // pred_check_branch
    %31 = sbr.rel (0) target = $region37
  $region36: #{mapped_model_forward.1} parent=0 // pred_region
    _
  $region37: #{mapped_model_forward.1} parent=0 // pred_fallthru
    _
  %v32 = vld [vmem:[%s0] sm:$0xff]
  %v33 = vld [vmem:[%s0 + $0x8] sm:$0xff]
  %36 = vst [vmem:[#allocation1] ss:$2 sm:$0xff] %v32
  %s37 = scalar_lea.vmem [#allocation1], 16
  %38 = vst [vmem:[%s37] ss:$2 sm:$0xff] %v33
  %v39 = vld.sshfl [vmem:[#allocation1] sm:$0xff pattern:$0x75316420]
  %v40 = vld.sshfl [vmem:[#allocation1 + $0x8] sm:$0xff pattern:$0x75316420]
  %v41 = vld.sshfl [vmem:[#allocation1 + $0x10] sm:$0xff pattern:$0x75316420]
  %v42 = vld.sshfl [vmem:[#allocation1 + $0x18] sm:$0xff pattern:$0x75316420]
  %47 = vrot.lane.b32.xlu0 %v39, 17
  %v48 = vpop.permute.xlu0 %47
  %49 = vrot.lane.b32.xlu0 %v40, 17
  %v50 = vpop.permute.xlu0 %49
  %51 = vrot.lane.b32.xlu0 %v41, 17
  %v52 = vpop.permute.xlu0 %51
  %53 = vrot.lane.b32.xlu0 %v42, 17
  %v54 = vpop.permute.xlu0 %53
  %v55 = vlaneseq
  %v56 = vand.u32 %v55, 127
  %vm57 = vcmp.lt.s32.totalorder %v56, 17
  %v58 = vsel %vm57, %v52, %v54
  %v59 = vsel %vm57, %v50, %v52
  %v60 = vsel %vm57, %v48, %v50
  %v61 = vsel %vm57, %v54, %v48
  %v62 = vld [vmem:[%s7] sm:$0xf]
  %v64 = vperm.slane %v62, 0
  %v65 = vperm.slane %v62, 1
  %v66 = vperm.slane %v62, 2
  %v67 = vperm.slane %v62, 3
  %v72 = vmul.f32 %v61, %v64
  %v73 = vmul.f32 %v60, %v65
  %v74 = vmul.f32 %v59, %v66
  %v75 = vmul.f32 %v58, %v67
  %v76 = vld [vmem:[%s1] sm:$0xff]
  %77 = vst [vmem:[#allocation1] ss:$2 sm:$0xff] %v32
  %s78 = scalar_lea.vmem [#allocation1], 16
  %79 = vst [vmem:[%s78] ss:$2 sm:$0xff] %v33
  %v80 = vld.sshfl [vmem:[#allocation1] sm:$0xff pattern:$0x75316420]
  %v81 = vld.sshfl [vmem:[#allocation1 + $0x8] sm:$0xff pattern:$0x75316420]
  %v82 = vld.sshfl [vmem:[#allocation1 + $0x10] sm:$0xff pattern:$0x75316420]
  %v83 = vld.sshfl [vmem:[#allocation1 + $0x18] sm:$0xff pattern:$0x75316420]
  %88 = vrot.lane.b32.xlu0 %v80, 16
  %v89 = vpop.permute.xlu0 %88
  %90 = vrot.lane.b32.xlu0 %v81, 16
  %v91 = vpop.permute.xlu0 %90
  %92 = vrot.lane.b32.xlu0 %v82, 16
  %v93 = vpop.permute.xlu0 %92
  %94 = vrot.lane.b32.xlu0 %v83, 16
  %v95 = vpop.permute.xlu0 %94
  %vm96 = vcmp.lt.s32.totalorder %v56, 16
  %v97 = vsel %vm96, %v93, %v95
  %v98 = vsel %vm96, %v91, %v93
  %v99 = vsel %vm96, %v89, %v91
  %v100 = vsel %vm96, %v95, %v89
  %s101 = scalar_lea.vmem %s7, 4
  %v102 = vld [vmem:[%s101] sm:$0xf]
  %v104 = vperm.slane %v102, 0
  %v105 = vperm.slane %v102, 1
  %v106 = vperm.slane %v102, 2
  %v107 = vperm.slane %v102, 3
  %v112 = vmul.f32 %v100, %v104
  %v113 = vmul.f32 %v99, %v105
  %v114 = vmul.f32 %v98, %v106
  %v115 = vmul.f32 %v97, %v107
  %s116 = scalar_lea.vmem %s1, 8
  %v117 = vld [vmem:[%s116] sm:$0xff]
  %vm118 = vcmask 31744
  %v120 = vsel %vm118, %v117, 0
  %vm122 = vcmask 1043456
  %v124 = vsel %vm122, %v112, 0
  %v127 = vsel %vm122, %v113, 0
  %v130 = vsel %vm122, %v114, 0
  %v133 = vsel %vm122, %v115, 0
  %135 = vmatpush.msra.mxu0 0.0
  %136 = vmatpush.msra.mxu0 0.0
  %137 = vmatpush.msra.mxu0 0.0
  %138 = vmatpush.msra.mxu0 0.0
  %139 = vmatpush.msra.mxu0 0.0
  %140 = vmatpush.msra.mxu0 0.0
  %141 = vmatpush.msra.mxu0 0.0
  %142 = vmatpush.msra.mxu0 0.0
  %143 = vmatpush.msra.mxu0 0.0
  %144 = vmatpush.msra.mxu0 0.0
  %145 = vmatpush.msra.mxu0 0.0
  %146 = vmatpush.msra.mxu0 0.0
  %147 = vmatpush.msra.mxu0 0.0
  %148 = vmatpush.msra.mxu0 0.0
  %149 = vmatpush.msra.mxu0 0.0
  %150 = vmatpush.msra.mxu0 %v124
  %151 = vmatmul.f32.gmra.mxu0 %v120
  %v152 = vpop.f32.mrf.mxu0
  %v153 = vadd.f32 0.0, %v152
  %154 = vdwg.mxu0
  %155 = vmatpush.msra.mxu0 0.0
  %156 = vmatpush.msra.mxu0 0.0
  %157 = vmatpush.msra.mxu0 0.0
  %158 = vmatpush.msra.mxu0 0.0
  %159 = vmatpush.msra.mxu0 0.0
  %160 = vmatpush.msra.mxu0 0.0
  %161 = vmatpush.msra.mxu0 0.0
  %162 = vmatpush.msra.mxu0 0.0
  %163 = vmatpush.msra.mxu0 0.0
  %164 = vmatpush.msra.mxu0 0.0
  %165 = vmatpush.msra.mxu0 0.0
  %166 = vmatpush.msra.mxu0 0.0
  %167 = vmatpush.msra.mxu0 0.0
  %168 = vmatpush.msra.mxu0 0.0
  %169 = vmatpush.msra.mxu0 0.0
  %170 = vmatpush.msra.mxu0 %v127
  %171 = vmatmul.f32.gmra.mxu0 %v120
  %v172 = vpop.f32.mrf.mxu0
  %v173 = vadd.f32 0.0, %v172
  %174 = vdwg.mxu0
  %175 = vmatpush.msra.mxu0 0.0
  %176 = vmatpush.msra.mxu0 0.0
  %177 = vmatpush.msra.mxu0 0.0
  %178 = vmatpush.msra.mxu0 0.0
  %179 = vmatpush.msra.mxu0 0.0
  %180 = vmatpush.msra.mxu0 0.0
  %181 = vmatpush.msra.mxu0 0.0
  %182 = vmatpush.msra.mxu0 0.0
  %183 = vmatpush.msra.mxu0 0.0
  %184 = vmatpush.msra.mxu0 0.0
  %185 = vmatpush.msra.mxu0 0.0
  %186 = vmatpush.msra.mxu0 0.0
  %187 = vmatpush.msra.mxu0 0.0
  %188 = vmatpush.msra.mxu0 0.0
  %189 = vmatpush.msra.mxu0 0.0
  %190 = vmatpush.msra.mxu0 %v130
  %191 = vmatmul.f32.gmra.mxu0 %v120
  %v192 = vpop.f32.mrf.mxu0
  %v193 = vadd.f32 0.0, %v192
  %194 = vdwg.mxu0
  %195 = vmatpush.msra.mxu0 0.0
  %196 = vmatpush.msra.mxu0 0.0
  %197 = vmatpush.msra.mxu0 0.0
  %198 = vmatpush.msra.mxu0 0.0
  %199 = vmatpush.msra.mxu0 0.0
  %200 = vmatpush.msra.mxu0 0.0
  %201 = vmatpush.msra.mxu0 0.0
  %202 = vmatpush.msra.mxu0 0.0
  %203 = vmatpush.msra.mxu0 0.0
  %204 = vmatpush.msra.mxu0 0.0
  %205 = vmatpush.msra.mxu0 0.0
  %206 = vmatpush.msra.mxu0 0.0
  %207 = vmatpush.msra.mxu0 0.0
  %208 = vmatpush.msra.mxu0 0.0
  %209 = vmatpush.msra.mxu0 0.0
  %210 = vmatpush.msra.mxu0 %v133
  %211 = vmatmul.f32.gmra.mxu0 %v120
  %v212 = vpop.f32.mrf.mxu0
  %v213 = vadd.f32 0.0, %v212
  %214 = vdwg.mxu0
  %v216 = vsel %vm118, %v76, 0
  %v219 = vsel %vm122, %v72, 0
  %v222 = vsel %vm122, %v73, 0
  %v225 = vsel %vm122, %v74, 0
  %v228 = vsel %vm122, %v75, 0
  %230 = vmatpush.msra.mxu0 0.0
  %231 = vmatpush.msra.mxu0 0.0
  %232 = vmatpush.msra.mxu0 0.0
  %233 = vmatpush.msra.mxu0 0.0
  %234 = vmatpush.msra.mxu0 0.0
  %235 = vmatpush.msra.mxu0 0.0
  %236 = vmatpush.msra.mxu0 0.0
  %237 = vmatpush.msra.mxu0 0.0
  %238 = vmatpush.msra.mxu0 0.0
  %239 = vmatpush.msra.mxu0 0.0
  %240 = vmatpush.msra.mxu0 0.0
  %241 = vmatpush.msra.mxu0 0.0
  %242 = vmatpush.msra.mxu0 0.0
  %243 = vmatpush.msra.mxu0 0.0
  %244 = vmatpush.msra.mxu0 0.0
  %245 = vmatpush.msra.mxu0 %v219
  %246 = vmatmul.f32.gmra.mxu0 %v216
  %v247 = vpop.f32.mrf.mxu0
  %v248 = vadd.f32 %v153, %v247
  %249 = vdwg.mxu0
  %250 = vmatpush.msra.mxu0 0.0
  %251 = vmatpush.msra.mxu0 0.0
  %252 = vmatpush.msra.mxu0 0.0
  %253 = vmatpush.msra.mxu0 0.0
  %254 = vmatpush.msra.mxu0 0.0
  %255 = vmatpush.msra.mxu0 0.0
  %256 = vmatpush.msra.mxu0 0.0
  %257 = vmatpush.msra.mxu0 0.0
  %258 = vmatpush.msra.mxu0 0.0
  %259 = vmatpush.msra.mxu0 0.0
  %260 = vmatpush.msra.mxu0 0.0
  %261 = vmatpush.msra.mxu0 0.0
  %262 = vmatpush.msra.mxu0 0.0
  %263 = vmatpush.msra.mxu0 0.0
  %264 = vmatpush.msra.mxu0 0.0
  %265 = vmatpush.msra.mxu0 %v222
  %266 = vmatmul.f32.gmra.mxu0 %v216
  %v267 = vpop.f32.mrf.mxu0
  %v268 = vadd.f32 %v173, %v267
  %269 = vdwg.mxu0
  %270 = vmatpush.msra.mxu0 0.0
  %271 = vmatpush.msra.mxu0 0.0
  %272 = vmatpush.msra.mxu0 0.0
  %273 = vmatpush.msra.mxu0 0.0
  %274 = vmatpush.msra.mxu0 0.0
  %275 = vmatpush.msra.mxu0 0.0
  %276 = vmatpush.msra.mxu0 0.0
  %277 = vmatpush.msra.mxu0 0.0
  %278 = vmatpush.msra.mxu0 0.0
  %279 = vmatpush.msra.mxu0 0.0
  %280 = vmatpush.msra.mxu0 0.0
  %281 = vmatpush.msra.mxu0 0.0
  %282 = vmatpush.msra.mxu0 0.0
  %283 = vmatpush.msra.mxu0 0.0
  %284 = vmatpush.msra.mxu0 0.0
  %285 = vmatpush.msra.mxu0 %v225
  %286 = vmatmul.f32.gmra.mxu0 %v216
  %v287 = vpop.f32.mrf.mxu0
  %v288 = vadd.f32 %v193, %v287
  %289 = vdwg.mxu0
  %290 = vmatpush.msra.mxu0 0.0
  %291 = vmatpush.msra.mxu0 0.0
  %292 = vmatpush.msra.mxu0 0.0
  %293 = vmatpush.msra.mxu0 0.0
  %294 = vmatpush.msra.mxu0 0.0
  %295 = vmatpush.msra.mxu0 0.0
  %296 = vmatpush.msra.mxu0 0.0
  %297 = vmatpush.msra.mxu0 0.0
  %298 = vmatpush.msra.mxu0 0.0
  %299 = vmatpush.msra.mxu0 0.0
  %300 = vmatpush.msra.mxu0 0.0
  %301 = vmatpush.msra.mxu0 0.0
  %302 = vmatpush.msra.mxu0 0.0
  %303 = vmatpush.msra.mxu0 0.0
  %304 = vmatpush.msra.mxu0 0.0
  %305 = vmatpush.msra.mxu0 %v228
  %306 = vmatmul.f32.gmra.mxu0 %v216
  %v307 = vpop.f32.mrf.mxu0
  %v308 = vadd.f32 %v213, %v307
  %309 = vdwg.mxu0
  %310 = vst [vmem:[#allocation1] ss:$2 sm:$0xff] %v32
  %s311 = scalar_lea.vmem [#allocation1], 16
  %312 = vst [vmem:[%s311] ss:$2 sm:$0xff] %v33
  %v313 = vld.sshfl [vmem:[#allocation1] sm:$0xff pattern:$0x75316420]
  %v314 = vld.sshfl [vmem:[#allocation1 + $0x8] sm:$0xff pattern:$0x75316420]
  %v315 = vld.sshfl [vmem:[#allocation1 + $0x10] sm:$0xff pattern:$0x75316420]
  %v316 = vld.sshfl [vmem:[#allocation1 + $0x18] sm:$0xff pattern:$0x75316420]
  %321 = vrot.lane.b32.xlu0 %v313, 15
  %v322 = vpop.permute.xlu0 %321
  %323 = vrot.lane.b32.xlu0 %v314, 15
  %v324 = vpop.permute.xlu0 %323
  %325 = vrot.lane.b32.xlu0 %v315, 15
  %v326 = vpop.permute.xlu0 %325
  %327 = vrot.lane.b32.xlu0 %v316, 15
  %v328 = vpop.permute.xlu0 %327
  %vm329 = vcmp.lt.s32.totalorder %v56, 15
  %v330 = vsel %vm329, %v326, %v328
  %v331 = vsel %vm329, %v324, %v326
  %v332 = vsel %vm329, %v322, %v324
  %v333 = vsel %vm329, %v328, %v322
  %s334 = scalar_lea.vmem %s7, 8
  %v335 = vld [vmem:[%s334] sm:$0xf]
  %v337 = vperm.slane %v335, 0
  %v338 = vperm.slane %v335, 1
  %v339 = vperm.slane %v335, 2
  %v340 = vperm.slane %v335, 3
  %v345 = vmul.f32 %v333, %v337
  %v346 = vmul.f32 %v332, %v338
  %v347 = vmul.f32 %v331, %v339
  %v348 = vmul.f32 %v330, %v340
  %s349 = scalar_lea.vmem %s1, 16
  %v350 = vld [vmem:[%s349] sm:$0xff]
  %v352 = vsel %vm118, %v350, 0
  %v355 = vsel %vm122, %v345, 0
  %v358 = vsel %vm122, %v346, 0
  %v361 = vsel %vm122, %v347, 0
  %v364 = vsel %vm122, %v348, 0
  %366 = vmatpush.msra.mxu0 0.0
  %367 = vmatpush.msra.mxu0 0.0
  %368 = vmatpush.msra.mxu0 0.0
  %369 = vmatpush.msra.mxu0 0.0
  %370 = vmatpush.msra.mxu0 0.0
  %371 = vmatpush.msra.mxu0 0.0
  %372 = vmatpush.msra.mxu0 0.0
  %373 = vmatpush.msra.mxu0 0.0
  %374 = vmatpush.msra.mxu0 0.0
  %375 = vmatpush.msra.mxu0 0.0
  %376 = vmatpush.msra.mxu0 0.0
  %377 = vmatpush.msra.mxu0 0.0
  %378 = vmatpush.msra.mxu0 0.0
  %379 = vmatpush.msra.mxu0 0.0
  %380 = vmatpush.msra.mxu0 0.0
  %381 = vmatpush.msra.mxu0 %v355
  %382 = vmatmul.f32.gmra.mxu0 %v352
  %v383 = vpop.f32.mrf.mxu0
  %v384 = vadd.f32 0.0, %v383
  %385 = vdwg.mxu0
  %386 = vmatpush.msra.mxu0 0.0
  %387 = vmatpush.msra.mxu0 0.0
  %388 = vmatpush.msra.mxu0 0.0
  %389 = vmatpush.msra.mxu0 0.0
  %390 = vmatpush.msra.mxu0 0.0
  %391 = vmatpush.msra.mxu0 0.0
  %392 = vmatpush.msra.mxu0 0.0
  %393 = vmatpush.msra.mxu0 0.0
  %394 = vmatpush.msra.mxu0 0.0
  %395 = vmatpush.msra.mxu0 0.0
  %396 = vmatpush.msra.mxu0 0.0
  %397 = vmatpush.msra.mxu0 0.0
  %398 = vmatpush.msra.mxu0 0.0
  %399 = vmatpush.msra.mxu0 0.0
  %400 = vmatpush.msra.mxu0 0.0
  %401 = vmatpush.msra.mxu0 %v358
  %402 = vmatmul.f32.gmra.mxu0 %v352
  %v403 = vpop.f32.mrf.mxu0
  %v404 = vadd.f32 0.0, %v403
  %405 = vdwg.mxu0
  %406 = vmatpush.msra.mxu0 0.0
  %407 = vmatpush.msra.mxu0 0.0
  %408 = vmatpush.msra.mxu0 0.0
  %409 = vmatpush.msra.mxu0 0.0
  %410 = vmatpush.msra.mxu0 0.0
  %411 = vmatpush.msra.mxu0 0.0
  %412 = vmatpush.msra.mxu0 0.0
  %413 = vmatpush.msra.mxu0 0.0
  %414 = vmatpush.msra.mxu0 0.0
  %415 = vmatpush.msra.mxu0 0.0
  %416 = vmatpush.msra.mxu0 0.0
  %417 = vmatpush.msra.mxu0 0.0
  %418 = vmatpush.msra.mxu0 0.0
  %419 = vmatpush.msra.mxu0 0.0
  %420 = vmatpush.msra.mxu0 0.0
  %421 = vmatpush.msra.mxu0 %v361
  %422 = vmatmul.f32.gmra.mxu0 %v352
  %v423 = vpop.f32.mrf.mxu0
  %v424 = vadd.f32 0.0, %v423
  %425 = vdwg.mxu0
  %426 = vmatpush.msra.mxu0 0.0
  %427 = vmatpush.msra.mxu0 0.0
  %428 = vmatpush.msra.mxu0 0.0
  %429 = vmatpush.msra.mxu0 0.0
  %430 = vmatpush.msra.mxu0 0.0
  %431 = vmatpush.msra.mxu0 0.0
  %432 = vmatpush.msra.mxu0 0.0
  %433 = vmatpush.msra.mxu0 0.0
  %434 = vmatpush.msra.mxu0 0.0
  %435 = vmatpush.msra.mxu0 0.0
  %436 = vmatpush.msra.mxu0 0.0
  %437 = vmatpush.msra.mxu0 0.0
  %438 = vmatpush.msra.mxu0 0.0
  %439 = vmatpush.msra.mxu0 0.0
  %440 = vmatpush.msra.mxu0 0.0
  %441 = vmatpush.msra.mxu0 %v364
  %442 = vmatmul.f32.gmra.mxu0 %v352
  %v443 = vpop.f32.mrf.mxu0
  %v444 = vadd.f32 0.0, %v443
  %445 = vdwg.mxu0
  %v446 = vadd.f32 %v248, %v384
  %v447 = vadd.f32 %v268, %v404
  %v448 = vadd.f32 %v288, %v424
  %v449 = vadd.f32 %v308, %v444
  %450 = vst [vmem:[#allocation1] ss:$2 sm:$0xff] %v32
  %s451 = scalar_lea.vmem [#allocation1], 16
  %452 = vst [vmem:[%s451] ss:$2 sm:$0xff] %v33
  %v453 = vld.sshfl [vmem:[#allocation1] sm:$0xff pattern:$0x75316420]
  %v454 = vld.sshfl [vmem:[#allocation1 + $0x8] sm:$0xff pattern:$0x75316420]
  %v455 = vld.sshfl [vmem:[#allocation1 + $0x10] sm:$0xff pattern:$0x75316420]
  %v456 = vld.sshfl [vmem:[#allocation1 + $0x18] sm:$0xff pattern:$0x75316420]
  %461 = vrot.lane.b32.xlu0 %v453, 1
  %v462 = vpop.permute.xlu0 %461
  %463 = vrot.lane.b32.xlu0 %v454, 1
  %v464 = vpop.permute.xlu0 %463
  %465 = vrot.lane.b32.xlu0 %v455, 1
  %v466 = vpop.permute.xlu0 %465
  %467 = vrot.lane.b32.xlu0 %v456, 1
  %v468 = vpop.permute.xlu0 %467
  %vm469 = vcmp.lt.s32.totalorder %v56, 1
  %v470 = vsel %vm469, %v466, %v468
  %v471 = vsel %vm469, %v464, %v466
  %v472 = vsel %vm469, %v462, %v464
  %v473 = vsel %vm469, %v468, %v462
  %s474 = scalar_lea.vmem %s7, 12
  %v475 = vld [vmem:[%s474] sm:$0xf]
  %v477 = vperm.slane %v475, 0
  %v478 = vperm.slane %v475, 1
  %v479 = vperm.slane %v475, 2
  %v480 = vperm.slane %v475, 3
  %v485 = vmul.f32 %v473, %v477
  %v486 = vmul.f32 %v472, %v478
  %v487 = vmul.f32 %v471, %v479
  %v488 = vmul.f32 %v470, %v480
  %s489 = scalar_lea.vmem %s1, 24
  %v490 = vld [vmem:[%s489] sm:$0xff]
  %v492 = vsel %vm118, %v490, 0
  %v495 = vsel %vm122, %v485, 0
  %v498 = vsel %vm122, %v486, 0
  %v501 = vsel %vm122, %v487, 0
  %v504 = vsel %vm122, %v488, 0
  %506 = vmatpush.msra.mxu0 0.0
  %507 = vmatpush.msra.mxu0 0.0
  %508 = vmatpush.msra.mxu0 0.0
  %509 = vmatpush.msra.mxu0 0.0
  %510 = vmatpush.msra.mxu0 0.0
  %511 = vmatpush.msra.mxu0 0.0
  %512 = vmatpush.msra.mxu0 0.0
  %513 = vmatpush.msra.mxu0 0.0
  %514 = vmatpush.msra.mxu0 0.0
  %515 = vmatpush.msra.mxu0 0.0
  %516 = vmatpush.msra.mxu0 0.0
  %517 = vmatpush.msra.mxu0 0.0
  %518 = vmatpush.msra.mxu0 0.0
  %519 = vmatpush.msra.mxu0 0.0
  %520 = vmatpush.msra.mxu0 0.0
  %521 = vmatpush.msra.mxu0 %v495
  %522 = vmatmul.f32.gmra.mxu0 %v492
  %v523 = vpop.f32.mrf.mxu0
  %v524 = vadd.f32 0.0, %v523
  %525 = vdwg.mxu0
  %526 = vmatpush.msra.mxu0 0.0
  %527 = vmatpush.msra.mxu0 0.0
  %528 = vmatpush.msra.mxu0 0.0
  %529 = vmatpush.msra.mxu0 0.0
  %530 = vmatpush.msra.mxu0 0.0
  %531 = vmatpush.msra.mxu0 0.0
  %532 = vmatpush.msra.mxu0 0.0
  %533 = vmatpush.msra.mxu0 0.0
  %534 = vmatpush.msra.mxu0 0.0
  %535 = vmatpush.msra.mxu0 0.0
  %536 = vmatpush.msra.mxu0 0.0
  %537 = vmatpush.msra.mxu0 0.0
  %538 = vmatpush.msra.mxu0 0.0
  %539 = vmatpush.msra.mxu0 0.0
  %540 = vmatpush.msra.mxu0 0.0
  %541 = vmatpush.msra.mxu0 %v498
  %542 = vmatmul.f32.gmra.mxu0 %v492
  %v543 = vpop.f32.mrf.mxu0
  %v544 = vadd.f32 0.0, %v543
  %545 = vdwg.mxu0
  %546 = vmatpush.msra.mxu0 0.0
  %547 = vmatpush.msra.mxu0 0.0
  %548 = vmatpush.msra.mxu0 0.0
  %549 = vmatpush.msra.mxu0 0.0
  %550 = vmatpush.msra.mxu0 0.0
  %551 = vmatpush.msra.mxu0 0.0
  %552 = vmatpush.msra.mxu0 0.0
  %553 = vmatpush.msra.mxu0 0.0
  %554 = vmatpush.msra.mxu0 0.0
  %555 = vmatpush.msra.mxu0 0.0
  %556 = vmatpush.msra.mxu0 0.0
  %557 = vmatpush.msra.mxu0 0.0
  %558 = vmatpush.msra.mxu0 0.0
  %559 = vmatpush.msra.mxu0 0.0
  %560 = vmatpush.msra.mxu0 0.0
  %561 = vmatpush.msra.mxu0 %v501
  %562 = vmatmul.f32.gmra.mxu0 %v492
  %v563 = vpop.f32.mrf.mxu0
  %v564 = vadd.f32 0.0, %v563
  %565 = vdwg.mxu0
  %566 = vmatpush.msra.mxu0 0.0
  %567 = vmatpush.msra.mxu0 0.0
  %568 = vmatpush.msra.mxu0 0.0
  %569 = vmatpush.msra.mxu0 0.0
  %570 = vmatpush.msra.mxu0 0.0
  %571 = vmatpush.msra.mxu0 0.0
  %572 = vmatpush.msra.mxu0 0.0
  %573 = vmatpush.msra.mxu0 0.0
  %574 = vmatpush.msra.mxu0 0.0
  %575 = vmatpush.msra.mxu0 0.0
  %576 = vmatpush.msra.mxu0 0.0
  %577 = vmatpush.msra.mxu0 0.0
  %578 = vmatpush.msra.mxu0 0.0
  %579 = vmatpush.msra.mxu0 0.0
  %580 = vmatpush.msra.mxu0 0.0
  %581 = vmatpush.msra.mxu0 %v504
  %582 = vmatmul.f32.gmra.mxu0 %v492
  %v583 = vpop.f32.mrf.mxu0
  %v584 = vadd.f32 0.0, %v583
  %585 = vdwg.mxu0
  %v586 = vadd.f32 %v446, %v524
  %v587 = vadd.f32 %v447, %v544
  %v588 = vadd.f32 %v448, %v564
  %v589 = vadd.f32 %v449, %v584
  %s590 = scalar_lea.vmem %s1, 32
  %v591 = vld [vmem:[%s590] sm:$0xff]
  %592 = vst [vmem:[#allocation1] ss:$2 sm:$0xff] %v32
  %s593 = scalar_lea.vmem [#allocation1], 16
  %594 = vst [vmem:[%s593] ss:$2 sm:$0xff] %v33
  %v595 = vld.sshfl [vmem:[#allocation1] sm:$0xff pattern:$0x75316420]
  %v596 = vld.sshfl [vmem:[#allocation1 + $0x8] sm:$0xff pattern:$0x75316420]
  %v597 = vld.sshfl [vmem:[#allocation1 + $0x10] sm:$0xff pattern:$0x75316420]
  %v598 = vld.sshfl [vmem:[#allocation1 + $0x18] sm:$0xff pattern:$0x75316420]
  %v600 = vsel %vm118, %v591, 0
  %v602 = vsel %vm122, %v595, 0
  %v604 = vsel %vm122, %v596, 0
  %v606 = vsel %vm122, %v597, 0
  %v608 = vsel %vm122, %v598, 0
  %610 = vmatpush.msra.mxu0 0.0
  %611 = vmatpush.msra.mxu0 0.0
  %612 = vmatpush.msra.mxu0 0.0
  %613 = vmatpush.msra.mxu0 0.0
  %614 = vmatpush.msra.mxu0 0.0
  %615 = vmatpush.msra.mxu0 0.0
  %616 = vmatpush.msra.mxu0 0.0
  %617 = vmatpush.msra.mxu0 0.0
  %618 = vmatpush.msra.mxu0 0.0
  %619 = vmatpush.msra.mxu0 0.0
  %620 = vmatpush.msra.mxu0 0.0
  %621 = vmatpush.msra.mxu0 0.0
  %622 = vmatpush.msra.mxu0 0.0
  %623 = vmatpush.msra.mxu0 0.0
  %624 = vmatpush.msra.mxu0 0.0
  %625 = vmatpush.msra.mxu0 %v602
  %626 = vmatmul.f32.gmra.mxu0 %v600
  %v627 = vpop.f32.mrf.mxu0
  %v628 = vadd.f32 0.0, %v627
  %629 = vdwg.mxu0
  %630 = vmatpush.msra.mxu0 0.0
  %631 = vmatpush.msra.mxu0 0.0
  %632 = vmatpush.msra.mxu0 0.0
  %633 = vmatpush.msra.mxu0 0.0
  %634 = vmatpush.msra.mxu0 0.0
  %635 = vmatpush.msra.mxu0 0.0
  %636 = vmatpush.msra.mxu0 0.0
  %637 = vmatpush.msra.mxu0 0.0
  %638 = vmatpush.msra.mxu0 0.0
  %639 = vmatpush.msra.mxu0 0.0
  %640 = vmatpush.msra.mxu0 0.0
  %641 = vmatpush.msra.mxu0 0.0
  %642 = vmatpush.msra.mxu0 0.0
  %643 = vmatpush.msra.mxu0 0.0
  %644 = vmatpush.msra.mxu0 0.0
  %645 = vmatpush.msra.mxu0 %v604
  %646 = vmatmul.f32.gmra.mxu0 %v600
  %v647 = vpop.f32.mrf.mxu0
  %v648 = vadd.f32 0.0, %v647
  %649 = vdwg.mxu0
  %650 = vmatpush.msra.mxu0 0.0
  %651 = vmatpush.msra.mxu0 0.0
  %652 = vmatpush.msra.mxu0 0.0
  %653 = vmatpush.msra.mxu0 0.0
  %654 = vmatpush.msra.mxu0 0.0
  %655 = vmatpush.msra.mxu0 0.0
  %656 = vmatpush.msra.mxu0 0.0
  %657 = vmatpush.msra.mxu0 0.0
  %658 = vmatpush.msra.mxu0 0.0
  %659 = vmatpush.msra.mxu0 0.0
  %660 = vmatpush.msra.mxu0 0.0
  %661 = vmatpush.msra.mxu0 0.0
  %662 = vmatpush.msra.mxu0 0.0
  %663 = vmatpush.msra.mxu0 0.0
  %664 = vmatpush.msra.mxu0 0.0
  %665 = vmatpush.msra.mxu0 %v606
  %666 = vmatmul.f32.gmra.mxu0 %v600
  %v667 = vpop.f32.mrf.mxu0
  %v668 = vadd.f32 0.0, %v667
  %669 = vdwg.mxu0
  %670 = vmatpush.msra.mxu0 0.0
  %671 = vmatpush.msra.mxu0 0.0
  %672 = vmatpush.msra.mxu0 0.0
  %673 = vmatpush.msra.mxu0 0.0
  %674 = vmatpush.msra.mxu0 0.0
  %675 = vmatpush.msra.mxu0 0.0
  %676 = vmatpush.msra.mxu0 0.0
  %677 = vmatpush.msra.mxu0 0.0
  %678 = vmatpush.msra.mxu0 0.0
  %679 = vmatpush.msra.mxu0 0.0
  %680 = vmatpush.msra.mxu0 0.0
  %681 = vmatpush.msra.mxu0 0.0
  %682 = vmatpush.msra.mxu0 0.0
  %683 = vmatpush.msra.mxu0 0.0
  %684 = vmatpush.msra.mxu0 0.0
  %685 = vmatpush.msra.mxu0 %v608
  %686 = vmatmul.f32.gmra.mxu0 %v600
  %v687 = vpop.f32.mrf.mxu0
  %v688 = vadd.f32 0.0, %v687
  %689 = vdwg.mxu0
  %v690 = vadd.f32 %v586, %v628
  %v691 = vadd.f32 %v587, %v648
  %v692 = vadd.f32 %v588, %v668
  %v693 = vadd.f32 %v589, %v688
  %694 = vst [vmem:[#allocation1] ss:$2 sm:$0xff] %v32
  %s695 = scalar_lea.vmem [#allocation1], 16
  %696 = vst [vmem:[%s695] ss:$2 sm:$0xff] %v33
  %v697 = vld.sshfl [vmem:[#allocation1] sm:$0xff pattern:$0x75316420]
  %v698 = vld.sshfl [vmem:[#allocation1 + $0x8] sm:$0xff pattern:$0x75316420]
  %v699 = vld.sshfl [vmem:[#allocation1 + $0x10] sm:$0xff pattern:$0x75316420]
  %v700 = vld.sshfl [vmem:[#allocation1 + $0x18] sm:$0xff pattern:$0x75316420]
  %705 = vrot.lane.b32.xlu0 %v697, 127
  %v706 = vpop.permute.xlu0 %705
  %707 = vrot.lane.b32.xlu0 %v698, 127
  %v708 = vpop.permute.xlu0 %707
  %709 = vrot.lane.b32.xlu0 %v699, 127
  %v710 = vpop.permute.xlu0 %709
  %711 = vrot.lane.b32.xlu0 %v700, 127
  %v712 = vpop.permute.xlu0 %711
  %vm713 = vcmp.lt.s32.totalorder %v56, 127
  %v714 = vsel %vm713, %v710, %v712
  %v715 = vsel %vm713, %v708, %v710
  %v716 = vsel %vm713, %v706, %v708
  %v717 = vsel %vm713, %v712, %v706
  %s718 = scalar_lea.vmem %s7, 20
  %v719 = vld [vmem:[%s718] sm:$0xf]
  %v721 = vperm.slane %v719, 0
  %v722 = vperm.slane %v719, 1
  %v723 = vperm.slane %v719, 2
  %v724 = vperm.slane %v719, 3
  %v729 = vmul.f32 %v716, %v721
  %v730 = vmul.f32 %v715, %v722
  %v731 = vmul.f32 %v714, %v723
  %v732 = vmul.f32 %v717, %v724
  %s733 = scalar_lea.vmem %s1, 40
  %v734 = vld [vmem:[%s733] sm:$0xff]
  %v736 = vsel %vm118, %v734, 0
  %v739 = vsel %vm122, %v729, 0
  %v742 = vsel %vm122, %v730, 0
  %v745 = vsel %vm122, %v731, 0
  %v748 = vsel %vm122, %v732, 0
  %750 = vmatpush.msra.mxu0 0.0
  %751 = vmatpush.msra.mxu0 0.0
  %752 = vmatpush.msra.mxu0 0.0
  %753 = vmatpush.msra.mxu0 0.0
  %754 = vmatpush.msra.mxu0 0.0
  %755 = vmatpush.msra.mxu0 0.0
  %756 = vmatpush.msra.mxu0 0.0
  %757 = vmatpush.msra.mxu0 0.0
  %758 = vmatpush.msra.mxu0 0.0
  %759 = vmatpush.msra.mxu0 0.0
  %760 = vmatpush.msra.mxu0 0.0
  %761 = vmatpush.msra.mxu0 0.0
  %762 = vmatpush.msra.mxu0 0.0
  %763 = vmatpush.msra.mxu0 0.0
  %764 = vmatpush.msra.mxu0 0.0
  %765 = vmatpush.msra.mxu0 %v739
  %766 = vmatmul.f32.gmra.mxu0 %v736
  %v767 = vpop.f32.mrf.mxu0
  %v768 = vadd.f32 0.0, %v767
  %769 = vdwg.mxu0
  %770 = vmatpush.msra.mxu0 0.0
  %771 = vmatpush.msra.mxu0 0.0
  %772 = vmatpush.msra.mxu0 0.0
  %773 = vmatpush.msra.mxu0 0.0
  %774 = vmatpush.msra.mxu0 0.0
  %775 = vmatpush.msra.mxu0 0.0
  %776 = vmatpush.msra.mxu0 0.0
  %777 = vmatpush.msra.mxu0 0.0
  %778 = vmatpush.msra.mxu0 0.0
  %779 = vmatpush.msra.mxu0 0.0
  %780 = vmatpush.msra.mxu0 0.0
  %781 = vmatpush.msra.mxu0 0.0
  %782 = vmatpush.msra.mxu0 0.0
  %783 = vmatpush.msra.mxu0 0.0
  %784 = vmatpush.msra.mxu0 0.0
  %785 = vmatpush.msra.mxu0 %v742
  %786 = vmatmul.f32.gmra.mxu0 %v736
  %v787 = vpop.f32.mrf.mxu0
  %v788 = vadd.f32 0.0, %v787
  %789 = vdwg.mxu0
  %790 = vmatpush.msra.mxu0 0.0
  %791 = vmatpush.msra.mxu0 0.0
  %792 = vmatpush.msra.mxu0 0.0
  %793 = vmatpush.msra.mxu0 0.0
  %794 = vmatpush.msra.mxu0 0.0
  %795 = vmatpush.msra.mxu0 0.0
  %796 = vmatpush.msra.mxu0 0.0
  %797 = vmatpush.msra.mxu0 0.0
  %798 = vmatpush.msra.mxu0 0.0
  %799 = vmatpush.msra.mxu0 0.0
  %800 = vmatpush.msra.mxu0 0.0
  %801 = vmatpush.msra.mxu0 0.0
  %802 = vmatpush.msra.mxu0 0.0
  %803 = vmatpush.msra.mxu0 0.0
  %804 = vmatpush.msra.mxu0 0.0
  %805 = vmatpush.msra.mxu0 %v745
  %806 = vmatmul.f32.gmra.mxu0 %v736
  %v807 = vpop.f32.mrf.mxu0
  %v808 = vadd.f32 0.0, %v807
  %809 = vdwg.mxu0
  %810 = vmatpush.msra.mxu0 0.0
  %811 = vmatpush.msra.mxu0 0.0
  %812 = vmatpush.msra.mxu0 0.0
  %813 = vmatpush.msra.mxu0 0.0
  %814 = vmatpush.msra.mxu0 0.0
  %815 = vmatpush.msra.mxu0 0.0
  %816 = vmatpush.msra.mxu0 0.0
  %817 = vmatpush.msra.mxu0 0.0
  %818 = vmatpush.msra.mxu0 0.0
  %819 = vmatpush.msra.mxu0 0.0
  %820 = vmatpush.msra.mxu0 0.0
  %821 = vmatpush.msra.mxu0 0.0
  %822 = vmatpush.msra.mxu0 0.0
  %823 = vmatpush.msra.mxu0 0.0
  %824 = vmatpush.msra.mxu0 0.0
  %825 = vmatpush.msra.mxu0 %v748
  %826 = vmatmul.f32.gmra.mxu0 %v736
  %v827 = vpop.f32.mrf.mxu0
  %v828 = vadd.f32 0.0, %v827
  %829 = vdwg.mxu0
  %v830 = vadd.f32 %v690, %v768
  %v831 = vadd.f32 %v691, %v788
  %v832 = vadd.f32 %v692, %v808
  %v833 = vadd.f32 %v693, %v828
  %834 = vst [vmem:[#allocation1] ss:$2 sm:$0xff] %v32
  %s835 = scalar_lea.vmem [#allocation1], 16
  %836 = vst [vmem:[%s835] ss:$2 sm:$0xff] %v33
  %v837 = vld.sshfl [vmem:[#allocation1] sm:$0xff pattern:$0x75316420]
  %v838 = vld.sshfl [vmem:[#allocation1 + $0x8] sm:$0xff pattern:$0x75316420]
  %v839 = vld.sshfl [vmem:[#allocation1 + $0x10] sm:$0xff pattern:$0x75316420]
  %v840 = vld.sshfl [vmem:[#allocation1 + $0x18] sm:$0xff pattern:$0x75316420]
  %845 = vrot.lane.b32.xlu0 %v837, 113
  %v846 = vpop.permute.xlu0 %845
  %847 = vrot.lane.b32.xlu0 %v838, 113
  %v848 = vpop.permute.xlu0 %847
  %849 = vrot.lane.b32.xlu0 %v839, 113
  %v850 = vpop.permute.xlu0 %849
  %851 = vrot.lane.b32.xlu0 %v840, 113
  %v852 = vpop.permute.xlu0 %851
  %vm853 = vcmp.lt.s32.totalorder %v56, 113
  %v854 = vsel %vm853, %v850, %v852
  %v855 = vsel %vm853, %v848, %v850
  %v856 = vsel %vm853, %v846, %v848
  %v857 = vsel %vm853, %v852, %v846
  %s858 = scalar_lea.vmem %s7, 24
  %v859 = vld [vmem:[%s858] sm:$0xf]
  %v861 = vperm.slane %v859, 0
  %v862 = vperm.slane %v859, 1
  %v863 = vperm.slane %v859, 2
  %v864 = vperm.slane %v859, 3
  %v869 = vmul.f32 %v856, %v861
  %v870 = vmul.f32 %v855, %v862
  %v871 = vmul.f32 %v854, %v863
  %v872 = vmul.f32 %v857, %v864
  %s873 = scalar_lea.vmem %s1, 48
  %v874 = vld [vmem:[%s873] sm:$0xff]
  %v876 = vsel %vm118, %v874, 0
  %v879 = vsel %vm122, %v869, 0
  %v882 = vsel %vm122, %v870, 0
  %v885 = vsel %vm122, %v871, 0
  %v888 = vsel %vm122, %v872, 0
  %890 = vmatpush.msra.mxu0 0.0
  %891 = vmatpush.msra.mxu0 0.0
  %892 = vmatpush.msra.mxu0 0.0
  %893 = vmatpush.msra.mxu0 0.0
  %894 = vmatpush.msra.mxu0 0.0
  %895 = vmatpush.msra.mxu0 0.0
  %896 = vmatpush.msra.mxu0 0.0
  %897 = vmatpush.msra.mxu0 0.0
  %898 = vmatpush.msra.mxu0 0.0
  %899 = vmatpush.msra.mxu0 0.0
  %900 = vmatpush.msra.mxu0 0.0
  %901 = vmatpush.msra.mxu0 0.0
  %902 = vmatpush.msra.mxu0 0.0
  %903 = vmatpush.msra.mxu0 0.0
  %904 = vmatpush.msra.mxu0 0.0
  %905 = vmatpush.msra.mxu0 %v879
  %906 = vmatmul.f32.gmra.mxu0 %v876
  %v907 = vpop.f32.mrf.mxu0
  %v908 = vadd.f32 0.0, %v907
  %909 = vdwg.mxu0
  %910 = vmatpush.msra.mxu0 0.0
  %911 = vmatpush.msra.mxu0 0.0
  %912 = vmatpush.msra.mxu0 0.0
  %913 = vmatpush.msra.mxu0 0.0
  %914 = vmatpush.msra.mxu0 0.0
  %915 = vmatpush.msra.mxu0 0.0
  %916 = vmatpush.msra.mxu0 0.0
  %917 = vmatpush.msra.mxu0 0.0
  %918 = vmatpush.msra.mxu0 0.0
  %919 = vmatpush.msra.mxu0 0.0
  %920 = vmatpush.msra.mxu0 0.0
  %921 = vmatpush.msra.mxu0 0.0
  %922 = vmatpush.msra.mxu0 0.0
  %923 = vmatpush.msra.mxu0 0.0
  %924 = vmatpush.msra.mxu0 0.0
  %925 = vmatpush.msra.mxu0 %v882
  %926 = vmatmul.f32.gmra.mxu0 %v876
  %v927 = vpop.f32.mrf.mxu0
  %v928 = vadd.f32 0.0, %v927
  %929 = vdwg.mxu0
  %930 = vmatpush.msra.mxu0 0.0
  %931 = vmatpush.msra.mxu0 0.0
  %932 = vmatpush.msra.mxu0 0.0
  %933 = vmatpush.msra.mxu0 0.0
  %934 = vmatpush.msra.mxu0 0.0
  %935 = vmatpush.msra.mxu0 0.0
  %936 = vmatpush.msra.mxu0 0.0
  %937 = vmatpush.msra.mxu0 0.0
  %938 = vmatpush.msra.mxu0 0.0
  %939 = vmatpush.msra.mxu0 0.0
  %940 = vmatpush.msra.mxu0 0.0
  %941 = vmatpush.msra.mxu0 0.0
  %942 = vmatpush.msra.mxu0 0.0
  %943 = vmatpush.msra.mxu0 0.0
  %944 = vmatpush.msra.mxu0 0.0
  %945 = vmatpush.msra.mxu0 %v885
  %946 = vmatmul.f32.gmra.mxu0 %v876
  %v947 = vpop.f32.mrf.mxu0
  %v948 = vadd.f32 0.0, %v947
  %949 = vdwg.mxu0
  %950 = vmatpush.msra.mxu0 0.0
  %951 = vmatpush.msra.mxu0 0.0
  %952 = vmatpush.msra.mxu0 0.0
  %953 = vmatpush.msra.mxu0 0.0
  %954 = vmatpush.msra.mxu0 0.0
  %955 = vmatpush.msra.mxu0 0.0
  %956 = vmatpush.msra.mxu0 0.0
  %957 = vmatpush.msra.mxu0 0.0
  %958 = vmatpush.msra.mxu0 0.0
  %959 = vmatpush.msra.mxu0 0.0
  %960 = vmatpush.msra.mxu0 0.0
  %961 = vmatpush.msra.mxu0 0.0
  %962 = vmatpush.msra.mxu0 0.0
  %963 = vmatpush.msra.mxu0 0.0
  %964 = vmatpush.msra.mxu0 0.0
  %965 = vmatpush.msra.mxu0 %v888
  %966 = vmatmul.f32.gmra.mxu0 %v876
  %v967 = vpop.f32.mrf.mxu0
  %v968 = vadd.f32 0.0, %v967
  %969 = vdwg.mxu0
  %v970 = vadd.f32 %v830, %v908
  %v971 = vadd.f32 %v831, %v928
  %v972 = vadd.f32 %v832, %v948
  %v973 = vadd.f32 %v833, %v968
  %974 = vst [vmem:[#allocation1] ss:$2 sm:$0xff] %v32
  %s975 = scalar_lea.vmem [#allocation1], 16
  %976 = vst [vmem:[%s975] ss:$2 sm:$0xff] %v33
  %v977 = vld.sshfl [vmem:[#allocation1] sm:$0xff pattern:$0x75316420]
  %v978 = vld.sshfl [vmem:[#allocation1 + $0x8] sm:$0xff pattern:$0x75316420]
  %v979 = vld.sshfl [vmem:[#allocation1 + $0x10] sm:$0xff pattern:$0x75316420]
  %v980 = vld.sshfl [vmem:[#allocation1 + $0x18] sm:$0xff pattern:$0x75316420]
  %985 = vrot.lane.b32.xlu0 %v977, 112
  %v986 = vpop.permute.xlu0 %985
  %987 = vrot.lane.b32.xlu0 %v978, 112
  %v988 = vpop.permute.xlu0 %987
  %989 = vrot.lane.b32.xlu0 %v979, 112
  %v990 = vpop.permute.xlu0 %989
  %991 = vrot.lane.b32.xlu0 %v980, 112
  %v992 = vpop.permute.xlu0 %991
  %vm993 = vcmp.lt.s32.totalorder %v56, 112
  %v994 = vsel %vm993, %v990, %v992
  %v995 = vsel %vm993, %v988, %v990
  %v996 = vsel %vm993, %v986, %v988
  %v997 = vsel %vm993, %v992, %v986
  %s998 = scalar_lea.vmem %s7, 28
  %v999 = vld [vmem:[%s998] sm:$0xf]
  %v1001 = vperm.slane %v999, 0
  %v1002 = vperm.slane %v999, 1
  %v1003 = vperm.slane %v999, 2
  %v1004 = vperm.slane %v999, 3
  %v1009 = vmul.f32 %v996, %v1001
  %v1010 = vmul.f32 %v995, %v1002
  %v1011 = vmul.f32 %v994, %v1003
  %v1012 = vmul.f32 %v997, %v1004
  %s1013 = scalar_lea.vmem %s1, 56
  %v1014 = vld [vmem:[%s1013] sm:$0xff]
  %v1016 = vsel %vm118, %v1014, 0
  %v1019 = vsel %vm122, %v1009, 0
  %v1022 = vsel %vm122, %v1010, 0
  %v1025 = vsel %vm122, %v1011, 0
  %v1028 = vsel %vm122, %v1012, 0
  %1030 = vmatpush.msra.mxu0 0.0
  %1031 = vmatpush.msra.mxu0 0.0
  %1032 = vmatpush.msra.mxu0 0.0
  %1033 = vmatpush.msra.mxu0 0.0
  %1034 = vmatpush.msra.mxu0 0.0
  %1035 = vmatpush.msra.mxu0 0.0
  %1036 = vmatpush.msra.mxu0 0.0
  %1037 = vmatpush.msra.mxu0 0.0
  %1038 = vmatpush.msra.mxu0 0.0
  %1039 = vmatpush.msra.mxu0 0.0
  %1040 = vmatpush.msra.mxu0 0.0
  %1041 = vmatpush.msra.mxu0 0.0
  %1042 = vmatpush.msra.mxu0 0.0
  %1043 = vmatpush.msra.mxu0 0.0
  %1044 = vmatpush.msra.mxu0 0.0
  %1045 = vmatpush.msra.mxu0 %v1019
  %1046 = vmatmul.f32.gmra.mxu0 %v1016
  %v1047 = vpop.f32.mrf.mxu0
  %v1048 = vadd.f32 0.0, %v1047
  %1049 = vdwg.mxu0
  %1050 = vmatpush.msra.mxu0 0.0
  %1051 = vmatpush.msra.mxu0 0.0
  %1052 = vmatpush.msra.mxu0 0.0
  %1053 = vmatpush.msra.mxu0 0.0
  %1054 = vmatpush.msra.mxu0 0.0
  %1055 = vmatpush.msra.mxu0 0.0
  %1056 = vmatpush.msra.mxu0 0.0
  %1057 = vmatpush.msra.mxu0 0.0
  %1058 = vmatpush.msra.mxu0 0.0
  %1059 = vmatpush.msra.mxu0 0.0
  %1060 = vmatpush.msra.mxu0 0.0
  %1061 = vmatpush.msra.mxu0 0.0
  %1062 = vmatpush.msra.mxu0 0.0
  %1063 = vmatpush.msra.mxu0 0.0
  %1064 = vmatpush.msra.mxu0 0.0
  %1065 = vmatpush.msra.mxu0 %v1022
  %1066 = vmatmul.f32.gmra.mxu0 %v1016
  %v1067 = vpop.f32.mrf.mxu0
  %v1068 = vadd.f32 0.0, %v1067
  %1069 = vdwg.mxu0
  %1070 = vmatpush.msra.mxu0 0.0
  %1071 = vmatpush.msra.mxu0 0.0
  %1072 = vmatpush.msra.mxu0 0.0
  %1073 = vmatpush.msra.mxu0 0.0
  %1074 = vmatpush.msra.mxu0 0.0
  %1075 = vmatpush.msra.mxu0 0.0
  %1076 = vmatpush.msra.mxu0 0.0
  %1077 = vmatpush.msra.mxu0 0.0
  %1078 = vmatpush.msra.mxu0 0.0
  %1079 = vmatpush.msra.mxu0 0.0
  %1080 = vmatpush.msra.mxu0 0.0
  %1081 = vmatpush.msra.mxu0 0.0
  %1082 = vmatpush.msra.mxu0 0.0
  %1083 = vmatpush.msra.mxu0 0.0
  %1084 = vmatpush.msra.mxu0 0.0
  %1085 = vmatpush.msra.mxu0 %v1025
  %1086 = vmatmul.f32.gmra.mxu0 %v1016
  %v1087 = vpop.f32.mrf.mxu0
  %v1088 = vadd.f32 0.0, %v1087
  %1089 = vdwg.mxu0
  %1090 = vmatpush.msra.mxu0 0.0
  %1091 = vmatpush.msra.mxu0 0.0
  %1092 = vmatpush.msra.mxu0 0.0
  %1093 = vmatpush.msra.mxu0 0.0
  %1094 = vmatpush.msra.mxu0 0.0
  %1095 = vmatpush.msra.mxu0 0.0
  %1096 = vmatpush.msra.mxu0 0.0
  %1097 = vmatpush.msra.mxu0 0.0
  %1098 = vmatpush.msra.mxu0 0.0
  %1099 = vmatpush.msra.mxu0 0.0
  %1100 = vmatpush.msra.mxu0 0.0
  %1101 = vmatpush.msra.mxu0 0.0
  %1102 = vmatpush.msra.mxu0 0.0
  %1103 = vmatpush.msra.mxu0 0.0
  %1104 = vmatpush.msra.mxu0 0.0
  %1105 = vmatpush.msra.mxu0 %v1028
  %1106 = vmatmul.f32.gmra.mxu0 %v1016
  %v1107 = vpop.f32.mrf.mxu0
  %v1108 = vadd.f32 0.0, %v1107
  %1109 = vdwg.mxu0
  %v1110 = vadd.f32 %v970, %v1048
  %v1111 = vadd.f32 %v971, %v1068
  %v1112 = vadd.f32 %v972, %v1088
  %v1113 = vadd.f32 %v973, %v1108
  %1114 = vst [vmem:[#allocation1] ss:$2 sm:$0xff] %v32
  %s1115 = scalar_lea.vmem [#allocation1], 16
  %1116 = vst [vmem:[%s1115] ss:$2 sm:$0xff] %v33
  %v1117 = vld.sshfl [vmem:[#allocation1] sm:$0xff pattern:$0x75316420]
  %v1118 = vld.sshfl [vmem:[#allocation1 + $0x8] sm:$0xff pattern:$0x75316420]
  %v1119 = vld.sshfl [vmem:[#allocation1 + $0x10] sm:$0xff pattern:$0x75316420]
  %v1120 = vld.sshfl [vmem:[#allocation1 + $0x18] sm:$0xff pattern:$0x75316420]
  %1125 = vrot.lane.b32.xlu0 %v1117, 111
  %v1126 = vpop.permute.xlu0 %1125
  %1127 = vrot.lane.b32.xlu0 %v1118, 111
  %v1128 = vpop.permute.xlu0 %1127
  %1129 = vrot.lane.b32.xlu0 %v1119, 111
  %v1130 = vpop.permute.xlu0 %1129
  %1131 = vrot.lane.b32.xlu0 %v1120, 111
  %v1132 = vpop.permute.xlu0 %1131
  %vm1133 = vcmp.lt.s32.totalorder %v56, 111
  %v1134 = vsel %vm1133, %v1130, %v1132
  %v1135 = vsel %vm1133, %v1128, %v1130
  %v1136 = vsel %vm1133, %v1126, %v1128
  %v1137 = vsel %vm1133, %v1132, %v1126
  %s1138 = scalar_lea.vmem %s7, 32
  %v1139 = vld [vmem:[%s1138] sm:$0xf]
  %v1141 = vperm.slane %v1139, 0
  %v1142 = vperm.slane %v1139, 1
  %v1143 = vperm.slane %v1139, 2
  %v1144 = vperm.slane %v1139, 3
  %v1149 = vmul.f32 %v1136, %v1141
  %v1150 = vmul.f32 %v1135, %v1142
  %v1151 = vmul.f32 %v1134, %v1143
  %v1152 = vmul.f32 %v1137, %v1144
  %s1153 = scalar_lea.vmem %s1, 64
  %v1154 = vld [vmem:[%s1153] sm:$0xff]
  %v1156 = vsel %vm118, %v1154, 0
  %v1159 = vsel %vm122, %v1149, 0
  %v1162 = vsel %vm122, %v1150, 0
  %v1165 = vsel %vm122, %v1151, 0
  %v1168 = vsel %vm122, %v1152, 0
  %1170 = vmatpush.msra.mxu0 0.0
  %1171 = vmatpush.msra.mxu0 0.0
  %1172 = vmatpush.msra.mxu0 0.0
  %1173 = vmatpush.msra.mxu0 0.0
  %1174 = vmatpush.msra.mxu0 0.0
  %1175 = vmatpush.msra.mxu0 0.0
  %1176 = vmatpush.msra.mxu0 0.0
  %1177 = vmatpush.msra.mxu0 0.0
  %1178 = vmatpush.msra.mxu0 0.0
  %1179 = vmatpush.msra.mxu0 0.0
  %1180 = vmatpush.msra.mxu0 0.0
  %1181 = vmatpush.msra.mxu0 0.0
  %1182 = vmatpush.msra.mxu0 0.0
  %1183 = vmatpush.msra.mxu0 0.0
  %1184 = vmatpush.msra.mxu0 0.0
  %1185 = vmatpush.msra.mxu0 %v1159
  %1186 = vmatmul.f32.gmra.mxu0 %v1156
  %v1187 = vpop.f32.mrf.mxu0
  %v1188 = vadd.f32 0.0, %v1187
  %1189 = vdwg.mxu0
  %1190 = vmatpush.msra.mxu0 0.0
  %1191 = vmatpush.msra.mxu0 0.0
  %1192 = vmatpush.msra.mxu0 0.0
  %1193 = vmatpush.msra.mxu0 0.0
  %1194 = vmatpush.msra.mxu0 0.0
  %1195 = vmatpush.msra.mxu0 0.0
  %1196 = vmatpush.msra.mxu0 0.0
  %1197 = vmatpush.msra.mxu0 0.0
  %1198 = vmatpush.msra.mxu0 0.0
  %1199 = vmatpush.msra.mxu0 0.0
  %1200 = vmatpush.msra.mxu0 0.0
  %1201 = vmatpush.msra.mxu0 0.0
  %1202 = vmatpush.msra.mxu0 0.0
  %1203 = vmatpush.msra.mxu0 0.0
  %1204 = vmatpush.msra.mxu0 0.0
  %1205 = vmatpush.msra.mxu0 %v1162
  %1206 = vmatmul.f32.gmra.mxu0 %v1156
  %v1207 = vpop.f32.mrf.mxu0
  %v1208 = vadd.f32 0.0, %v1207
  %1209 = vdwg.mxu0
  %1210 = vmatpush.msra.mxu0 0.0
  %1211 = vmatpush.msra.mxu0 0.0
  %1212 = vmatpush.msra.mxu0 0.0
  %1213 = vmatpush.msra.mxu0 0.0
  %1214 = vmatpush.msra.mxu0 0.0
  %1215 = vmatpush.msra.mxu0 0.0
  %1216 = vmatpush.msra.mxu0 0.0
  %1217 = vmatpush.msra.mxu0 0.0
  %1218 = vmatpush.msra.mxu0 0.0
  %1219 = vmatpush.msra.mxu0 0.0
  %1220 = vmatpush.msra.mxu0 0.0
  %1221 = vmatpush.msra.mxu0 0.0
  %1222 = vmatpush.msra.mxu0 0.0
  %1223 = vmatpush.msra.mxu0 0.0
  %1224 = vmatpush.msra.mxu0 0.0
  %1225 = vmatpush.msra.mxu0 %v1165
  %1226 = vmatmul.f32.gmra.mxu0 %v1156
  %v1227 = vpop.f32.mrf.mxu0
  %v1228 = vadd.f32 0.0, %v1227
  %1229 = vdwg.mxu0
  %1230 = vmatpush.msra.mxu0 0.0
  %1231 = vmatpush.msra.mxu0 0.0
  %1232 = vmatpush.msra.mxu0 0.0
  %1233 = vmatpush.msra.mxu0 0.0
  %1234 = vmatpush.msra.mxu0 0.0
  %1235 = vmatpush.msra.mxu0 0.0
  %1236 = vmatpush.msra.mxu0 0.0
  %1237 = vmatpush.msra.mxu0 0.0
  %1238 = vmatpush.msra.mxu0 0.0
  %1239 = vmatpush.msra.mxu0 0.0
  %1240 = vmatpush.msra.mxu0 0.0
  %1241 = vmatpush.msra.mxu0 0.0
  %1242 = vmatpush.msra.mxu0 0.0
  %1243 = vmatpush.msra.mxu0 0.0
  %1244 = vmatpush.msra.mxu0 0.0
  %1245 = vmatpush.msra.mxu0 %v1168
  %1246 = vmatmul.f32.gmra.mxu0 %v1156
  %v1247 = vpop.f32.mrf.mxu0
  %v1248 = vadd.f32 0.0, %v1247
  %1249 = vdwg.mxu0
  %v1250 = vadd.f32 %v1110, %v1188
  %v1251 = vadd.f32 %v1111, %v1208
  %v1252 = vadd.f32 %v1112, %v1228
  %v1253 = vadd.f32 %v1113, %v1248
  %v1254 = vld [vmem:[%s2] sm:$0xff]
  %1256 = vset.pattern.permute.xlu0 0
  %1257 = vperm.xlu0 %1256, %v1254
  %v1258 = vpop.permute.xlu0 %1257
  %v1260 = vadd.f32 %v1250, %v1258
  %v1261 = vadd.f32 %v1251, %v1258
  %v1262 = vadd.f32 %v1252, %v1258
  %v1263 = vadd.f32 %v1253, %v1258
  %v1264 = vmax.f32 %v1260, 0.0
  %v1265 = vmax.f32 %v1261, 0.0
  %v1266 = vmax.f32 %v1262, 0.0
  %v1267 = vmax.f32 %v1263, 0.0
  %1268 = vrot.lane.b32.xlu0 %v1264, 17
  %v1269 = vpop.permute.xlu0 %1268
  %1270 = vrot.lane.b32.xlu0 %v1265, 17
  %v1271 = vpop.permute.xlu0 %1270
  %1272 = vrot.lane.b32.xlu0 %v1266, 17
  %v1273 = vpop.permute.xlu0 %1272
  %1274 = vrot.lane.b32.xlu0 %v1267, 17
  %v1275 = vpop.permute.xlu0 %1274
  %v1276 = vsel %vm57, %v1273, %v1275
  %v1277 = vsel %vm57, %v1271, %v1273
  %v1278 = vsel %vm57, %v1269, %v1271
  %v1279 = vsel %vm57, %v1275, %v1269
  %v1280 = vmul.f32 %v1279, %v64
  %v1281 = vmul.f32 %v1278, %v65
  %v1282 = vmul.f32 %v1277, %v66
  %v1283 = vmul.f32 %v1276, %v67
  %v1284 = vld [vmem:[%s3] sm:$0xff]
  %1285 = vrot.lane.b32.xlu0 %v1264, 16
  %v1286 = vpop.permute.xlu0 %1285
  %1287 = vrot.lane.b32.xlu0 %v1265, 16
  %v1288 = vpop.permute.xlu0 %1287
  %1289 = vrot.lane.b32.xlu0 %v1266, 16
  %v1290 = vpop.permute.xlu0 %1289
  %1291 = vrot.lane.b32.xlu0 %v1267, 16
  %v1292 = vpop.permute.xlu0 %1291
  %v1293 = vsel %vm96, %v1290, %v1292
  %v1294 = vsel %vm96, %v1288, %v1290
  %v1295 = vsel %vm96, %v1286, %v1288
  %v1296 = vsel %vm96, %v1292, %v1286
  %v1297 = vmul.f32 %v1296, %v104
  %v1298 = vmul.f32 %v1295, %v105
  %v1299 = vmul.f32 %v1294, %v106
  %v1300 = vmul.f32 %v1293, %v107
  %s1301 = scalar_lea.vmem %s3, 8
  %v1302 = vld [vmem:[%s1301] sm:$0xff]
  %vm1303 = vcmask 64512
  %v1305 = vsel %vm1303, %v1302, 0
  %1307 = vmatpush.msra.mxu0 0.0
  %1308 = vmatpush.msra.mxu0 0.0
  %1309 = vmatpush.msra.mxu0 0.0
  %1310 = vmatpush.msra.mxu0 0.0
  %1311 = vmatpush.msra.mxu0 0.0
  %1312 = vmatpush.msra.mxu0 0.0
  %1313 = vmatpush.msra.mxu0 0.0
  %1314 = vmatpush.msra.mxu0 0.0
  %1315 = vmatpush.msra.mxu0 0.0
  %1316 = vmatpush.msra.mxu0 0.0
  %1317 = vmatpush.msra.mxu0 0.0
  %1318 = vmatpush.msra.mxu0 0.0
  %1319 = vmatpush.msra.mxu0 0.0
  %1320 = vmatpush.msra.mxu0 0.0
  %1321 = vmatpush.msra.mxu0 0.0
  %1322 = vmatpush.msra.mxu0 %v1297
  %1323 = vmatmul.f32.gmra.mxu0 %v1305
  %v1324 = vpop.f32.mrf.mxu0
  %v1325 = vadd.f32 0.0, %v1324
  %1326 = vdwg.mxu0
  %1327 = vmatpush.msra.mxu0 0.0
  %1328 = vmatpush.msra.mxu0 0.0
  %1329 = vmatpush.msra.mxu0 0.0
  %1330 = vmatpush.msra.mxu0 0.0
  %1331 = vmatpush.msra.mxu0 0.0
  %1332 = vmatpush.msra.mxu0 0.0
  %1333 = vmatpush.msra.mxu0 0.0
  %1334 = vmatpush.msra.mxu0 0.0
  %1335 = vmatpush.msra.mxu0 0.0
  %1336 = vmatpush.msra.mxu0 0.0
  %1337 = vmatpush.msra.mxu0 0.0
  %1338 = vmatpush.msra.mxu0 0.0
  %1339 = vmatpush.msra.mxu0 0.0
  %1340 = vmatpush.msra.mxu0 0.0
  %1341 = vmatpush.msra.mxu0 0.0
  %1342 = vmatpush.msra.mxu0 %v1298
  %1343 = vmatmul.f32.gmra.mxu0 %v1305
  %v1344 = vpop.f32.mrf.mxu0
  %v1345 = vadd.f32 0.0, %v1344
  %1346 = vdwg.mxu0
  %1347 = vmatpush.msra.mxu0 0.0
  %1348 = vmatpush.msra.mxu0 0.0
  %1349 = vmatpush.msra.mxu0 0.0
  %1350 = vmatpush.msra.mxu0 0.0
  %1351 = vmatpush.msra.mxu0 0.0
  %1352 = vmatpush.msra.mxu0 0.0
  %1353 = vmatpush.msra.mxu0 0.0
  %1354 = vmatpush.msra.mxu0 0.0
  %1355 = vmatpush.msra.mxu0 0.0
  %1356 = vmatpush.msra.mxu0 0.0
  %1357 = vmatpush.msra.mxu0 0.0
  %1358 = vmatpush.msra.mxu0 0.0
  %1359 = vmatpush.msra.mxu0 0.0
  %1360 = vmatpush.msra.mxu0 0.0
  %1361 = vmatpush.msra.mxu0 0.0
  %1362 = vmatpush.msra.mxu0 %v1299
  %1363 = vmatmul.f32.gmra.mxu0 %v1305
  %v1364 = vpop.f32.mrf.mxu0
  %v1365 = vadd.f32 0.0, %v1364
  %1366 = vdwg.mxu0
  %1367 = vmatpush.msra.mxu0 0.0
  %1368 = vmatpush.msra.mxu0 0.0
  %1369 = vmatpush.msra.mxu0 0.0
  %1370 = vmatpush.msra.mxu0 0.0
  %1371 = vmatpush.msra.mxu0 0.0
  %1372 = vmatpush.msra.mxu0 0.0
  %1373 = vmatpush.msra.mxu0 0.0
  %1374 = vmatpush.msra.mxu0 0.0
  %1375 = vmatpush.msra.mxu0 0.0
  %1376 = vmatpush.msra.mxu0 0.0
  %1377 = vmatpush.msra.mxu0 0.0
  %1378 = vmatpush.msra.mxu0 0.0
  %1379 = vmatpush.msra.mxu0 0.0
  %1380 = vmatpush.msra.mxu0 0.0
  %1381 = vmatpush.msra.mxu0 0.0
  %1382 = vmatpush.msra.mxu0 %v1300
  %1383 = vmatmul.f32.gmra.mxu0 %v1305
  %v1384 = vpop.f32.mrf.mxu0
  %v1385 = vadd.f32 0.0, %v1384
  %1386 = vdwg.mxu0
  %v1388 = vsel %vm1303, %v1284, 0
  %1390 = vmatpush.msra.mxu0 0.0
  %1391 = vmatpush.msra.mxu0 0.0
  %1392 = vmatpush.msra.mxu0 0.0
  %1393 = vmatpush.msra.mxu0 0.0
  %1394 = vmatpush.msra.mxu0 0.0
  %1395 = vmatpush.msra.mxu0 0.0
  %1396 = vmatpush.msra.mxu0 0.0
  %1397 = vmatpush.msra.mxu0 0.0
  %1398 = vmatpush.msra.mxu0 0.0
  %1399 = vmatpush.msra.mxu0 0.0
  %1400 = vmatpush.msra.mxu0 0.0
  %1401 = vmatpush.msra.mxu0 0.0
  %1402 = vmatpush.msra.mxu0 0.0
  %1403 = vmatpush.msra.mxu0 0.0
  %1404 = vmatpush.msra.mxu0 0.0
  %1405 = vmatpush.msra.mxu0 %v1280
  %1406 = vmatmul.f32.gmra.mxu0 %v1388
  %v1407 = vpop.f32.mrf.mxu0
  %v1408 = vadd.f32 %v1325, %v1407
  %1409 = vdwg.mxu0
  %1410 = vmatpush.msra.mxu0 0.0
  %1411 = vmatpush.msra.mxu0 0.0
  %1412 = vmatpush.msra.mxu0 0.0
  %1413 = vmatpush.msra.mxu0 0.0
  %1414 = vmatpush.msra.mxu0 0.0
  %1415 = vmatpush.msra.mxu0 0.0
  %1416 = vmatpush.msra.mxu0 0.0
  %1417 = vmatpush.msra.mxu0 0.0
  %1418 = vmatpush.msra.mxu0 0.0
  %1419 = vmatpush.msra.mxu0 0.0
  %1420 = vmatpush.msra.mxu0 0.0
  %1421 = vmatpush.msra.mxu0 0.0
  %1422 = vmatpush.msra.mxu0 0.0
  %1423 = vmatpush.msra.mxu0 0.0
  %1424 = vmatpush.msra.mxu0 0.0
  %1425 = vmatpush.msra.mxu0 %v1281
  %1426 = vmatmul.f32.gmra.mxu0 %v1388
  %v1427 = vpop.f32.mrf.mxu0
  %v1428 = vadd.f32 %v1345, %v1427
  %1429 = vdwg.mxu0
  %1430 = vmatpush.msra.mxu0 0.0
  %1431 = vmatpush.msra.mxu0 0.0
  %1432 = vmatpush.msra.mxu0 0.0
  %1433 = vmatpush.msra.mxu0 0.0
  %1434 = vmatpush.msra.mxu0 0.0
  %1435 = vmatpush.msra.mxu0 0.0
  %1436 = vmatpush.msra.mxu0 0.0
  %1437 = vmatpush.msra.mxu0 0.0
  %1438 = vmatpush.msra.mxu0 0.0
  %1439 = vmatpush.msra.mxu0 0.0
  %1440 = vmatpush.msra.mxu0 0.0
  %1441 = vmatpush.msra.mxu0 0.0
  %1442 = vmatpush.msra.mxu0 0.0
  %1443 = vmatpush.msra.mxu0 0.0
  %1444 = vmatpush.msra.mxu0 0.0
  %1445 = vmatpush.msra.mxu0 %v1282
  %1446 = vmatmul.f32.gmra.mxu0 %v1388
  %v1447 = vpop.f32.mrf.mxu0
  %v1448 = vadd.f32 %v1365, %v1447
  %1449 = vdwg.mxu0
  %1450 = vmatpush.msra.mxu0 0.0
  %1451 = vmatpush.msra.mxu0 0.0
  %1452 = vmatpush.msra.mxu0 0.0
  %1453 = vmatpush.msra.mxu0 0.0
  %1454 = vmatpush.msra.mxu0 0.0
  %1455 = vmatpush.msra.mxu0 0.0
  %1456 = vmatpush.msra.mxu0 0.0
  %1457 = vmatpush.msra.mxu0 0.0
  %1458 = vmatpush.msra.mxu0 0.0
  %1459 = vmatpush.msra.mxu0 0.0
  %1460 = vmatpush.msra.mxu0 0.0
  %1461 = vmatpush.msra.mxu0 0.0
  %1462 = vmatpush.msra.mxu0 0.0
  %1463 = vmatpush.msra.mxu0 0.0
  %1464 = vmatpush.msra.mxu0 0.0
  %1465 = vmatpush.msra.mxu0 %v1283
  %1466 = vmatmul.f32.gmra.mxu0 %v1388
  %v1467 = vpop.f32.mrf.mxu0
  %v1468 = vadd.f32 %v1385, %v1467
  %1469 = vdwg.mxu0
  %1470 = vrot.lane.b32.xlu0 %v1264, 15
  %v1471 = vpop.permute.xlu0 %1470
  %1472 = vrot.lane.b32.xlu0 %v1265, 15
  %v1473 = vpop.permute.xlu0 %1472
  %1474 = vrot.lane.b32.xlu0 %v1266, 15
  %v1475 = vpop.permute.xlu0 %1474
  %1476 = vrot.lane.b32.xlu0 %v1267, 15
  %v1477 = vpop.permute.xlu0 %1476
  %v1478 = vsel %vm329, %v1475, %v1477
  %v1479 = vsel %vm329, %v1473, %v1475
  %v1480 = vsel %vm329, %v1471, %v1473
  %v1481 = vsel %vm329, %v1477, %v1471
  %v1482 = vmul.f32 %v1481, %v337
  %v1483 = vmul.f32 %v1480, %v338
  %v1484 = vmul.f32 %v1479, %v339
  %v1485 = vmul.f32 %v1478, %v340
  %s1486 = scalar_lea.vmem %s3, 16
  %v1487 = vld [vmem:[%s1486] sm:$0xff]
  %v1489 = vsel %vm1303, %v1487, 0
  %1491 = vmatpush.msra.mxu0 0.0
  %1492 = vmatpush.msra.mxu0 0.0
  %1493 = vmatpush.msra.mxu0 0.0
  %1494 = vmatpush.msra.mxu0 0.0
  %1495 = vmatpush.msra.mxu0 0.0
  %1496 = vmatpush.msra.mxu0 0.0
  %1497 = vmatpush.msra.mxu0 0.0
  %1498 = vmatpush.msra.mxu0 0.0
  %1499 = vmatpush.msra.mxu0 0.0
  %1500 = vmatpush.msra.mxu0 0.0
  %1501 = vmatpush.msra.mxu0 0.0
  %1502 = vmatpush.msra.mxu0 0.0
  %1503 = vmatpush.msra.mxu0 0.0
  %1504 = vmatpush.msra.mxu0 0.0
  %1505 = vmatpush.msra.mxu0 0.0
  %1506 = vmatpush.msra.mxu0 %v1482
  %1507 = vmatmul.f32.gmra.mxu0 %v1489
  %v1508 = vpop.f32.mrf.mxu0
  %v1509 = vadd.f32 0.0, %v1508
  %1510 = vdwg.mxu0
  %1511 = vmatpush.msra.mxu0 0.0
  %1512 = vmatpush.msra.mxu0 0.0
  %1513 = vmatpush.msra.mxu0 0.0
  %1514 = vmatpush.msra.mxu0 0.0
  %1515 = vmatpush.msra.mxu0 0.0
  %1516 = vmatpush.msra.mxu0 0.0
  %1517 = vmatpush.msra.mxu0 0.0
  %1518 = vmatpush.msra.mxu0 0.0
  %1519 = vmatpush.msra.mxu0 0.0
  %1520 = vmatpush.msra.mxu0 0.0
  %1521 = vmatpush.msra.mxu0 0.0
  %1522 = vmatpush.msra.mxu0 0.0
  %1523 = vmatpush.msra.mxu0 0.0
  %1524 = vmatpush.msra.mxu0 0.0
  %1525 = vmatpush.msra.mxu0 0.0
  %1526 = vmatpush.msra.mxu0 %v1483
  %1527 = vmatmul.f32.gmra.mxu0 %v1489
  %v1528 = vpop.f32.mrf.mxu0
  %v1529 = vadd.f32 0.0, %v1528
  %1530 = vdwg.mxu0
  %1531 = vmatpush.msra.mxu0 0.0
  %1532 = vmatpush.msra.mxu0 0.0
  %1533 = vmatpush.msra.mxu0 0.0
  %1534 = vmatpush.msra.mxu0 0.0
  %1535 = vmatpush.msra.mxu0 0.0
  %1536 = vmatpush.msra.mxu0 0.0
  %1537 = vmatpush.msra.mxu0 0.0
  %1538 = vmatpush.msra.mxu0 0.0
  %1539 = vmatpush.msra.mxu0 0.0
  %1540 = vmatpush.msra.mxu0 0.0
  %1541 = vmatpush.msra.mxu0 0.0
  %1542 = vmatpush.msra.mxu0 0.0
  %1543 = vmatpush.msra.mxu0 0.0
  %1544 = vmatpush.msra.mxu0 0.0
  %1545 = vmatpush.msra.mxu0 0.0
  %1546 = vmatpush.msra.mxu0 %v1484
  %1547 = vmatmul.f32.gmra.mxu0 %v1489
  %v1548 = vpop.f32.mrf.mxu0
  %v1549 = vadd.f32 0.0, %v1548
  %1550 = vdwg.mxu0
  %1551 = vmatpush.msra.mxu0 0.0
  %1552 = vmatpush.msra.mxu0 0.0
  %1553 = vmatpush.msra.mxu0 0.0
  %1554 = vmatpush.msra.mxu0 0.0
  %1555 = vmatpush.msra.mxu0 0.0
  %1556 = vmatpush.msra.mxu0 0.0
  %1557 = vmatpush.msra.mxu0 0.0
  %1558 = vmatpush.msra.mxu0 0.0
  %1559 = vmatpush.msra.mxu0 0.0
  %1560 = vmatpush.msra.mxu0 0.0
  %1561 = vmatpush.msra.mxu0 0.0
  %1562 = vmatpush.msra.mxu0 0.0
  %1563 = vmatpush.msra.mxu0 0.0
  %1564 = vmatpush.msra.mxu0 0.0
  %1565 = vmatpush.msra.mxu0 0.0
  %1566 = vmatpush.msra.mxu0 %v1485
  %1567 = vmatmul.f32.gmra.mxu0 %v1489
  %v1568 = vpop.f32.mrf.mxu0
  %v1569 = vadd.f32 0.0, %v1568
  %1570 = vdwg.mxu0
  %v1571 = vadd.f32 %v1408, %v1509
  %v1572 = vadd.f32 %v1428, %v1529
  %v1573 = vadd.f32 %v1448, %v1549
  %v1574 = vadd.f32 %v1468, %v1569
  %1575 = vrot.lane.b32.xlu0 %v1264, 1
  %v1576 = vpop.permute.xlu0 %1575
  %1577 = vrot.lane.b32.xlu0 %v1265, 1
  %v1578 = vpop.permute.xlu0 %1577
  %1579 = vrot.lane.b32.xlu0 %v1266, 1
  %v1580 = vpop.permute.xlu0 %1579
  %1581 = vrot.lane.b32.xlu0 %v1267, 1
  %v1582 = vpop.permute.xlu0 %1581
  %v1583 = vsel %vm469, %v1580, %v1582
  %v1584 = vsel %vm469, %v1578, %v1580
  %v1585 = vsel %vm469, %v1576, %v1578
  %v1586 = vsel %vm469, %v1582, %v1576
  %v1587 = vmul.f32 %v1586, %v477
  %v1588 = vmul.f32 %v1585, %v478
  %v1589 = vmul.f32 %v1584, %v479
  %v1590 = vmul.f32 %v1583, %v480
  %s1591 = scalar_lea.vmem %s3, 24
  %v1592 = vld [vmem:[%s1591] sm:$0xff]
  %v1594 = vsel %vm1303, %v1592, 0
  %1596 = vmatpush.msra.mxu0 0.0
  %1597 = vmatpush.msra.mxu0 0.0
  %1598 = vmatpush.msra.mxu0 0.0
  %1599 = vmatpush.msra.mxu0 0.0
  %1600 = vmatpush.msra.mxu0 0.0
  %1601 = vmatpush.msra.mxu0 0.0
  %1602 = vmatpush.msra.mxu0 0.0
  %1603 = vmatpush.msra.mxu0 0.0
  %1604 = vmatpush.msra.mxu0 0.0
  %1605 = vmatpush.msra.mxu0 0.0
  %1606 = vmatpush.msra.mxu0 0.0
  %1607 = vmatpush.msra.mxu0 0.0
  %1608 = vmatpush.msra.mxu0 0.0
  %1609 = vmatpush.msra.mxu0 0.0
  %1610 = vmatpush.msra.mxu0 0.0
  %1611 = vmatpush.msra.mxu0 %v1587
  %1612 = vmatmul.f32.gmra.mxu0 %v1594
  %v1613 = vpop.f32.mrf.mxu0
  %v1614 = vadd.f32 0.0, %v1613
  %1615 = vdwg.mxu0
  %1616 = vmatpush.msra.mxu0 0.0
  %1617 = vmatpush.msra.mxu0 0.0
  %1618 = vmatpush.msra.mxu0 0.0
  %1619 = vmatpush.msra.mxu0 0.0
  %1620 = vmatpush.msra.mxu0 0.0
  %1621 = vmatpush.msra.mxu0 0.0
  %1622 = vmatpush.msra.mxu0 0.0
  %1623 = vmatpush.msra.mxu0 0.0
  %1624 = vmatpush.msra.mxu0 0.0
  %1625 = vmatpush.msra.mxu0 0.0
  %1626 = vmatpush.msra.mxu0 0.0
  %1627 = vmatpush.msra.mxu0 0.0
  %1628 = vmatpush.msra.mxu0 0.0
  %1629 = vmatpush.msra.mxu0 0.0
  %1630 = vmatpush.msra.mxu0 0.0
  %1631 = vmatpush.msra.mxu0 %v1588
  %1632 = vmatmul.f32.gmra.mxu0 %v1594
  %v1633 = vpop.f32.mrf.mxu0
  %v1634 = vadd.f32 0.0, %v1633
  %1635 = vdwg.mxu0
  %1636 = vmatpush.msra.mxu0 0.0
  %1637 = vmatpush.msra.mxu0 0.0
  %1638 = vmatpush.msra.mxu0 0.0
  %1639 = vmatpush.msra.mxu0 0.0
  %1640 = vmatpush.msra.mxu0 0.0
  %1641 = vmatpush.msra.mxu0 0.0
  %1642 = vmatpush.msra.mxu0 0.0
  %1643 = vmatpush.msra.mxu0 0.0
  %1644 = vmatpush.msra.mxu0 0.0
  %1645 = vmatpush.msra.mxu0 0.0
  %1646 = vmatpush.msra.mxu0 0.0
  %1647 = vmatpush.msra.mxu0 0.0
  %1648 = vmatpush.msra.mxu0 0.0
  %1649 = vmatpush.msra.mxu0 0.0
  %1650 = vmatpush.msra.mxu0 0.0
  %1651 = vmatpush.msra.mxu0 %v1589
  %1652 = vmatmul.f32.gmra.mxu0 %v1594
  %v1653 = vpop.f32.mrf.mxu0
  %v1654 = vadd.f32 0.0, %v1653
  %1655 = vdwg.mxu0
  %1656 = vmatpush.msra.mxu0 0.0
  %1657 = vmatpush.msra.mxu0 0.0
  %1658 = vmatpush.msra.mxu0 0.0
  %1659 = vmatpush.msra.mxu0 0.0
  %1660 = vmatpush.msra.mxu0 0.0
  %1661 = vmatpush.msra.mxu0 0.0
  %1662 = vmatpush.msra.mxu0 0.0
  %1663 = vmatpush.msra.mxu0 0.0
  %1664 = vmatpush.msra.mxu0 0.0
  %1665 = vmatpush.msra.mxu0 0.0
  %1666 = vmatpush.msra.mxu0 0.0
  %1667 = vmatpush.msra.mxu0 0.0
  %1668 = vmatpush.msra.mxu0 0.0
  %1669 = vmatpush.msra.mxu0 0.0
  %1670 = vmatpush.msra.mxu0 0.0
  %1671 = vmatpush.msra.mxu0 %v1590
  %1672 = vmatmul.f32.gmra.mxu0 %v1594
  %v1673 = vpop.f32.mrf.mxu0
  %v1674 = vadd.f32 0.0, %v1673
  %1675 = vdwg.mxu0
  %v1676 = vadd.f32 %v1571, %v1614
  %v1677 = vadd.f32 %v1572, %v1634
  %v1678 = vadd.f32 %v1573, %v1654
  %v1679 = vadd.f32 %v1574, %v1674
  %s1680 = scalar_lea.vmem %s3, 32
  %v1681 = vld [vmem:[%s1680] sm:$0xff]
  %v1683 = vsel %vm1303, %v1681, 0
  %1685 = vmatpush.msra.mxu0 0.0
  %1686 = vmatpush.msra.mxu0 0.0
  %1687 = vmatpush.msra.mxu0 0.0
  %1688 = vmatpush.msra.mxu0 0.0
  %1689 = vmatpush.msra.mxu0 0.0
  %1690 = vmatpush.msra.mxu0 0.0
  %1691 = vmatpush.msra.mxu0 0.0
  %1692 = vmatpush.msra.mxu0 0.0
  %1693 = vmatpush.msra.mxu0 0.0
  %1694 = vmatpush.msra.mxu0 0.0
  %1695 = vmatpush.msra.mxu0 0.0
  %1696 = vmatpush.msra.mxu0 0.0
  %1697 = vmatpush.msra.mxu0 0.0
  %1698 = vmatpush.msra.mxu0 0.0
  %1699 = vmatpush.msra.mxu0 0.0
  %1700 = vmatpush.msra.mxu0 %v1264
  %1701 = vmatmul.f32.gmra.mxu0 %v1683
  %v1702 = vpop.f32.mrf.mxu0
  %v1703 = vadd.f32 0.0, %v1702
  %1704 = vdwg.mxu0
  %1705 = vmatpush.msra.mxu0 0.0
  %1706 = vmatpush.msra.mxu0 0.0
  %1707 = vmatpush.msra.mxu0 0.0
  %1708 = vmatpush.msra.mxu0 0.0
  %1709 = vmatpush.msra.mxu0 0.0
  %1710 = vmatpush.msra.mxu0 0.0
  %1711 = vmatpush.msra.mxu0 0.0
  %1712 = vmatpush.msra.mxu0 0.0
  %1713 = vmatpush.msra.mxu0 0.0
  %1714 = vmatpush.msra.mxu0 0.0
  %1715 = vmatpush.msra.mxu0 0.0
  %1716 = vmatpush.msra.mxu0 0.0
  %1717 = vmatpush.msra.mxu0 0.0
  %1718 = vmatpush.msra.mxu0 0.0
  %1719 = vmatpush.msra.mxu0 0.0
  %1720 = vmatpush.msra.mxu0 %v1265
  %1721 = vmatmul.f32.gmra.mxu0 %v1683
  %v1722 = vpop.f32.mrf.mxu0
  %v1723 = vadd.f32 0.0, %v1722
  %1724 = vdwg.mxu0
  %1725 = vmatpush.msra.mxu0 0.0
  %1726 = vmatpush.msra.mxu0 0.0
  %1727 = vmatpush.msra.mxu0 0.0
  %1728 = vmatpush.msra.mxu0 0.0
  %1729 = vmatpush.msra.mxu0 0.0
  %1730 = vmatpush.msra.mxu0 0.0
  %1731 = vmatpush.msra.mxu0 0.0
  %1732 = vmatpush.msra.mxu0 0.0
  %1733 = vmatpush.msra.mxu0 0.0
  %1734 = vmatpush.msra.mxu0 0.0
  %1735 = vmatpush.msra.mxu0 0.0
  %1736 = vmatpush.msra.mxu0 0.0
  %1737 = vmatpush.msra.mxu0 0.0
  %1738 = vmatpush.msra.mxu0 0.0
  %1739 = vmatpush.msra.mxu0 0.0
  %1740 = vmatpush.msra.mxu0 %v1266
  %1741 = vmatmul.f32.gmra.mxu0 %v1683
  %v1742 = vpop.f32.mrf.mxu0
  %v1743 = vadd.f32 0.0, %v1742
  %1744 = vdwg.mxu0
  %1745 = vmatpush.msra.mxu0 0.0
  %1746 = vmatpush.msra.mxu0 0.0
  %1747 = vmatpush.msra.mxu0 0.0
  %1748 = vmatpush.msra.mxu0 0.0
  %1749 = vmatpush.msra.mxu0 0.0
  %1750 = vmatpush.msra.mxu0 0.0
  %1751 = vmatpush.msra.mxu0 0.0
  %1752 = vmatpush.msra.mxu0 0.0
  %1753 = vmatpush.msra.mxu0 0.0
  %1754 = vmatpush.msra.mxu0 0.0
  %1755 = vmatpush.msra.mxu0 0.0
  %1756 = vmatpush.msra.mxu0 0.0
  %1757 = vmatpush.msra.mxu0 0.0
  %1758 = vmatpush.msra.mxu0 0.0
  %1759 = vmatpush.msra.mxu0 0.0
  %1760 = vmatpush.msra.mxu0 %v1267
  %1761 = vmatmul.f32.gmra.mxu0 %v1683
  %v1762 = vpop.f32.mrf.mxu0
  %v1763 = vadd.f32 0.0, %v1762
  %1764 = vdwg.mxu0
  %v1765 = vadd.f32 %v1676, %v1703
  %v1766 = vadd.f32 %v1677, %v1723
  %v1767 = vadd.f32 %v1678, %v1743
  %v1768 = vadd.f32 %v1679, %v1763
  %1769 = vrot.lane.b32.xlu0 %v1264, 127
  %v1770 = vpop.permute.xlu0 %1769
  %1771 = vrot.lane.b32.xlu0 %v1265, 127
  %v1772 = vpop.permute.xlu0 %1771
  %1773 = vrot.lane.b32.xlu0 %v1266, 127
  %v1774 = vpop.permute.xlu0 %1773
  %1775 = vrot.lane.b32.xlu0 %v1267, 127
  %v1776 = vpop.permute.xlu0 %1775
  %v1777 = vsel %vm713, %v1774, %v1776
  %v1778 = vsel %vm713, %v1772, %v1774
  %v1779 = vsel %vm713, %v1770, %v1772
  %v1780 = vsel %vm713, %v1776, %v1770
  %v1781 = vmul.f32 %v1779, %v721
  %v1782 = vmul.f32 %v1778, %v722
  %v1783 = vmul.f32 %v1777, %v723
  %v1784 = vmul.f32 %v1780, %v724
  %s1785 = scalar_lea.vmem %s3, 40
  %v1786 = vld [vmem:[%s1785] sm:$0xff]
  %v1788 = vsel %vm1303, %v1786, 0
  %1790 = vmatpush.msra.mxu0 0.0
  %1791 = vmatpush.msra.mxu0 0.0
  %1792 = vmatpush.msra.mxu0 0.0
  %1793 = vmatpush.msra.mxu0 0.0
  %1794 = vmatpush.msra.mxu0 0.0
  %1795 = vmatpush.msra.mxu0 0.0
  %1796 = vmatpush.msra.mxu0 0.0
  %1797 = vmatpush.msra.mxu0 0.0
  %1798 = vmatpush.msra.mxu0 0.0
  %1799 = vmatpush.msra.mxu0 0.0
  %1800 = vmatpush.msra.mxu0 0.0
  %1801 = vmatpush.msra.mxu0 0.0
  %1802 = vmatpush.msra.mxu0 0.0
  %1803 = vmatpush.msra.mxu0 0.0
  %1804 = vmatpush.msra.mxu0 0.0
  %1805 = vmatpush.msra.mxu0 %v1781
  %1806 = vmatmul.f32.gmra.mxu0 %v1788
  %v1807 = vpop.f32.mrf.mxu0
  %v1808 = vadd.f32 0.0, %v1807
  %1809 = vdwg.mxu0
  %1810 = vmatpush.msra.mxu0 0.0
  %1811 = vmatpush.msra.mxu0 0.0
  %1812 = vmatpush.msra.mxu0 0.0
  %1813 = vmatpush.msra.mxu0 0.0
  %1814 = vmatpush.msra.mxu0 0.0
  %1815 = vmatpush.msra.mxu0 0.0
  %1816 = vmatpush.msra.mxu0 0.0
  %1817 = vmatpush.msra.mxu0 0.0
  %1818 = vmatpush.msra.mxu0 0.0
  %1819 = vmatpush.msra.mxu0 0.0
  %1820 = vmatpush.msra.mxu0 0.0
  %1821 = vmatpush.msra.mxu0 0.0
  %1822 = vmatpush.msra.mxu0 0.0
  %1823 = vmatpush.msra.mxu0 0.0
  %1824 = vmatpush.msra.mxu0 0.0
  %1825 = vmatpush.msra.mxu0 %v1782
  %1826 = vmatmul.f32.gmra.mxu0 %v1788
  %v1827 = vpop.f32.mrf.mxu0
  %v1828 = vadd.f32 0.0, %v1827
  %1829 = vdwg.mxu0
  %1830 = vmatpush.msra.mxu0 0.0
  %1831 = vmatpush.msra.mxu0 0.0
  %1832 = vmatpush.msra.mxu0 0.0
  %1833 = vmatpush.msra.mxu0 0.0
  %1834 = vmatpush.msra.mxu0 0.0
  %1835 = vmatpush.msra.mxu0 0.0
  %1836 = vmatpush.msra.mxu0 0.0
  %1837 = vmatpush.msra.mxu0 0.0
  %1838 = vmatpush.msra.mxu0 0.0
  %1839 = vmatpush.msra.mxu0 0.0
  %1840 = vmatpush.msra.mxu0 0.0
  %1841 = vmatpush.msra.mxu0 0.0
  %1842 = vmatpush.msra.mxu0 0.0
  %1843 = vmatpush.msra.mxu0 0.0
  %1844 = vmatpush.msra.mxu0 0.0
  %1845 = vmatpush.msra.mxu0 %v1783
  %1846 = vmatmul.f32.gmra.mxu0 %v1788
  %v1847 = vpop.f32.mrf.mxu0
  %v1848 = vadd.f32 0.0, %v1847
  %1849 = vdwg.mxu0
  %1850 = vmatpush.msra.mxu0 0.0
  %1851 = vmatpush.msra.mxu0 0.0
  %1852 = vmatpush.msra.mxu0 0.0
  %1853 = vmatpush.msra.mxu0 0.0
  %1854 = vmatpush.msra.mxu0 0.0
  %1855 = vmatpush.msra.mxu0 0.0
  %1856 = vmatpush.msra.mxu0 0.0
  %1857 = vmatpush.msra.mxu0 0.0
  %1858 = vmatpush.msra.mxu0 0.0
  %1859 = vmatpush.msra.mxu0 0.0
  %1860 = vmatpush.msra.mxu0 0.0
  %1861 = vmatpush.msra.mxu0 0.0
  %1862 = vmatpush.msra.mxu0 0.0
  %1863 = vmatpush.msra.mxu0 0.0
  %1864 = vmatpush.msra.mxu0 0.0
  %1865 = vmatpush.msra.mxu0 %v1784
  %1866 = vmatmul.f32.gmra.mxu0 %v1788
  %v1867 = vpop.f32.mrf.mxu0
  %v1868 = vadd.f32 0.0, %v1867
  %1869 = vdwg.mxu0
  %v1870 = vadd.f32 %v1765, %v1808
  %v1871 = vadd.f32 %v1766, %v1828
  %v1872 = vadd.f32 %v1767, %v1848
  %v1873 = vadd.f32 %v1768, %v1868
  %1874 = vrot.lane.b32.xlu0 %v1264, 113
  %v1875 = vpop.permute.xlu0 %1874
  %1876 = vrot.lane.b32.xlu0 %v1265, 113
  %v1877 = vpop.permute.xlu0 %1876
  %1878 = vrot.lane.b32.xlu0 %v1266, 113
  %v1879 = vpop.permute.xlu0 %1878
  %1880 = vrot.lane.b32.xlu0 %v1267, 113
  %v1881 = vpop.permute.xlu0 %1880
  %v1882 = vsel %vm853, %v1879, %v1881
  %v1883 = vsel %vm853, %v1877, %v1879
  %v1884 = vsel %vm853, %v1875, %v1877
  %v1885 = vsel %vm853, %v1881, %v1875
  %v1886 = vmul.f32 %v1884, %v861
  %v1887 = vmul.f32 %v1883, %v862
  %v1888 = vmul.f32 %v1882, %v863
  %v1889 = vmul.f32 %v1885, %v864
  %s1890 = scalar_lea.vmem %s3, 48
  %v1891 = vld [vmem:[%s1890] sm:$0xff]
  %v1893 = vsel %vm1303, %v1891, 0
  %1895 = vmatpush.msra.mxu0 0.0
  %1896 = vmatpush.msra.mxu0 0.0
  %1897 = vmatpush.msra.mxu0 0.0
  %1898 = vmatpush.msra.mxu0 0.0
  %1899 = vmatpush.msra.mxu0 0.0
  %1900 = vmatpush.msra.mxu0 0.0
  %1901 = vmatpush.msra.mxu0 0.0
  %1902 = vmatpush.msra.mxu0 0.0
  %1903 = vmatpush.msra.mxu0 0.0
  %1904 = vmatpush.msra.mxu0 0.0
  %1905 = vmatpush.msra.mxu0 0.0
  %1906 = vmatpush.msra.mxu0 0.0
  %1907 = vmatpush.msra.mxu0 0.0
  %1908 = vmatpush.msra.mxu0 0.0
  %1909 = vmatpush.msra.mxu0 0.0
  %1910 = vmatpush.msra.mxu0 %v1886
  %1911 = vmatmul.f32.gmra.mxu0 %v1893
  %v1912 = vpop.f32.mrf.mxu0
  %v1913 = vadd.f32 0.0, %v1912
  %1914 = vdwg.mxu0
  %1915 = vmatpush.msra.mxu0 0.0
  %1916 = vmatpush.msra.mxu0 0.0
  %1917 = vmatpush.msra.mxu0 0.0
  %1918 = vmatpush.msra.mxu0 0.0
  %1919 = vmatpush.msra.mxu0 0.0
  %1920 = vmatpush.msra.mxu0 0.0
  %1921 = vmatpush.msra.mxu0 0.0
  %1922 = vmatpush.msra.mxu0 0.0
  %1923 = vmatpush.msra.mxu0 0.0
  %1924 = vmatpush.msra.mxu0 0.0
  %1925 = vmatpush.msra.mxu0 0.0
  %1926 = vmatpush.msra.mxu0 0.0
  %1927 = vmatpush.msra.mxu0 0.0
  %1928 = vmatpush.msra.mxu0 0.0
  %1929 = vmatpush.msra.mxu0 0.0
  %1930 = vmatpush.msra.mxu0 %v1887
  %1931 = vmatmul.f32.gmra.mxu0 %v1893
  %v1932 = vpop.f32.mrf.mxu0
  %v1933 = vadd.f32 0.0, %v1932
  %1934 = vdwg.mxu0
  %1935 = vmatpush.msra.mxu0 0.0
  %1936 = vmatpush.msra.mxu0 0.0
  %1937 = vmatpush.msra.mxu0 0.0
  %1938 = vmatpush.msra.mxu0 0.0
  %1939 = vmatpush.msra.mxu0 0.0
  %1940 = vmatpush.msra.mxu0 0.0
  %1941 = vmatpush.msra.mxu0 0.0
  %1942 = vmatpush.msra.mxu0 0.0
  %1943 = vmatpush.msra.mxu0 0.0
  %1944 = vmatpush.msra.mxu0 0.0
  %1945 = vmatpush.msra.mxu0 0.0
  %1946 = vmatpush.msra.mxu0 0.0
  %1947 = vmatpush.msra.mxu0 0.0
  %1948 = vmatpush.msra.mxu0 0.0
  %1949 = vmatpush.msra.mxu0 0.0
  %1950 = vmatpush.msra.mxu0 %v1888
  %1951 = vmatmul.f32.gmra.mxu0 %v1893
  %v1952 = vpop.f32.mrf.mxu0
  %v1953 = vadd.f32 0.0, %v1952
  %1954 = vdwg.mxu0
  %1955 = vmatpush.msra.mxu0 0.0
  %1956 = vmatpush.msra.mxu0 0.0
  %1957 = vmatpush.msra.mxu0 0.0
  %1958 = vmatpush.msra.mxu0 0.0
  %1959 = vmatpush.msra.mxu0 0.0
  %1960 = vmatpush.msra.mxu0 0.0
  %1961 = vmatpush.msra.mxu0 0.0
  %1962 = vmatpush.msra.mxu0 0.0
  %1963 = vmatpush.msra.mxu0 0.0
  %1964 = vmatpush.msra.mxu0 0.0
  %1965 = vmatpush.msra.mxu0 0.0
  %1966 = vmatpush.msra.mxu0 0.0
  %1967 = vmatpush.msra.mxu0 0.0
  %1968 = vmatpush.msra.mxu0 0.0
  %1969 = vmatpush.msra.mxu0 0.0
  %1970 = vmatpush.msra.mxu0 %v1889
  %1971 = vmatmul.f32.gmra.mxu0 %v1893
  %v1972 = vpop.f32.mrf.mxu0
  %v1973 = vadd.f32 0.0, %v1972
  %1974 = vdwg.mxu0
  %v1975 = vadd.f32 %v1870, %v1913
  %v1976 = vadd.f32 %v1871, %v1933
  %v1977 = vadd.f32 %v1872, %v1953
  %v1978 = vadd.f32 %v1873, %v1973
  %1979 = vrot.lane.b32.xlu0 %v1264, 112
  %v1980 = vpop.permute.xlu0 %1979
  %1981 = vrot.lane.b32.xlu0 %v1265, 112
  %v1982 = vpop.permute.xlu0 %1981
  %1983 = vrot.lane.b32.xlu0 %v1266, 112
  %v1984 = vpop.permute.xlu0 %1983
  %1985 = vrot.lane.b32.xlu0 %v1267, 112
  %v1986 = vpop.permute.xlu0 %1985
  %v1987 = vsel %vm993, %v1984, %v1986
  %v1988 = vsel %vm993, %v1982, %v1984
  %v1989 = vsel %vm993, %v1980, %v1982
  %v1990 = vsel %vm993, %v1986, %v1980
  %v1991 = vmul.f32 %v1989, %v1001
  %v1992 = vmul.f32 %v1988, %v1002
  %v1993 = vmul.f32 %v1987, %v1003
  %v1994 = vmul.f32 %v1990, %v1004
  %s1995 = scalar_lea.vmem %s3, 56
  %v1996 = vld [vmem:[%s1995] sm:$0xff]
  %v1998 = vsel %vm1303, %v1996, 0
  %2000 = vmatpush.msra.mxu0 0.0
  %2001 = vmatpush.msra.mxu0 0.0
  %2002 = vmatpush.msra.mxu0 0.0
  %2003 = vmatpush.msra.mxu0 0.0
  %2004 = vmatpush.msra.mxu0 0.0
  %2005 = vmatpush.msra.mxu0 0.0
  %2006 = vmatpush.msra.mxu0 0.0
  %2007 = vmatpush.msra.mxu0 0.0
  %2008 = vmatpush.msra.mxu0 0.0
  %2009 = vmatpush.msra.mxu0 0.0
  %2010 = vmatpush.msra.mxu0 0.0
  %2011 = vmatpush.msra.mxu0 0.0
  %2012 = vmatpush.msra.mxu0 0.0
  %2013 = vmatpush.msra.mxu0 0.0
  %2014 = vmatpush.msra.mxu0 0.0
  %2015 = vmatpush.msra.mxu0 %v1991
  %2016 = vmatmul.f32.gmra.mxu0 %v1998
  %v2017 = vpop.f32.mrf.mxu0
  %v2018 = vadd.f32 0.0, %v2017
  %2019 = vdwg.mxu0
  %2020 = vmatpush.msra.mxu0 0.0
  %2021 = vmatpush.msra.mxu0 0.0
  %2022 = vmatpush.msra.mxu0 0.0
  %2023 = vmatpush.msra.mxu0 0.0
  %2024 = vmatpush.msra.mxu0 0.0
  %2025 = vmatpush.msra.mxu0 0.0
  %2026 = vmatpush.msra.mxu0 0.0
  %2027 = vmatpush.msra.mxu0 0.0
  %2028 = vmatpush.msra.mxu0 0.0
  %2029 = vmatpush.msra.mxu0 0.0
  %2030 = vmatpush.msra.mxu0 0.0
  %2031 = vmatpush.msra.mxu0 0.0
  %2032 = vmatpush.msra.mxu0 0.0
  %2033 = vmatpush.msra.mxu0 0.0
  %2034 = vmatpush.msra.mxu0 0.0
  %2035 = vmatpush.msra.mxu0 %v1992
  %2036 = vmatmul.f32.gmra.mxu0 %v1998
  %v2037 = vpop.f32.mrf.mxu0
  %v2038 = vadd.f32 0.0, %v2037
  %2039 = vdwg.mxu0
  %2040 = vmatpush.msra.mxu0 0.0
  %2041 = vmatpush.msra.mxu0 0.0
  %2042 = vmatpush.msra.mxu0 0.0
  %2043 = vmatpush.msra.mxu0 0.0
  %2044 = vmatpush.msra.mxu0 0.0
  %2045 = vmatpush.msra.mxu0 0.0
  %2046 = vmatpush.msra.mxu0 0.0
  %2047 = vmatpush.msra.mxu0 0.0
  %2048 = vmatpush.msra.mxu0 0.0
  %2049 = vmatpush.msra.mxu0 0.0
  %2050 = vmatpush.msra.mxu0 0.0
  %2051 = vmatpush.msra.mxu0 0.0
  %2052 = vmatpush.msra.mxu0 0.0
  %2053 = vmatpush.msra.mxu0 0.0
  %2054 = vmatpush.msra.mxu0 0.0
  %2055 = vmatpush.msra.mxu0 %v1993
  %2056 = vmatmul.f32.gmra.mxu0 %v1998
  %v2057 = vpop.f32.mrf.mxu0
  %v2058 = vadd.f32 0.0, %v2057
  %2059 = vdwg.mxu0
  %2060 = vmatpush.msra.mxu0 0.0
  %2061 = vmatpush.msra.mxu0 0.0
  %2062 = vmatpush.msra.mxu0 0.0
  %2063 = vmatpush.msra.mxu0 0.0
  %2064 = vmatpush.msra.mxu0 0.0
  %2065 = vmatpush.msra.mxu0 0.0
  %2066 = vmatpush.msra.mxu0 0.0
  %2067 = vmatpush.msra.mxu0 0.0
  %2068 = vmatpush.msra.mxu0 0.0
  %2069 = vmatpush.msra.mxu0 0.0
  %2070 = vmatpush.msra.mxu0 0.0
  %2071 = vmatpush.msra.mxu0 0.0
  %2072 = vmatpush.msra.mxu0 0.0
  %2073 = vmatpush.msra.mxu0 0.0
  %2074 = vmatpush.msra.mxu0 0.0
  %2075 = vmatpush.msra.mxu0 %v1994
  %2076 = vmatmul.f32.gmra.mxu0 %v1998
  %v2077 = vpop.f32.mrf.mxu0
  %v2078 = vadd.f32 0.0, %v2077
  %2079 = vdwg.mxu0
  %v2080 = vadd.f32 %v1975, %v2018
  %v2081 = vadd.f32 %v1976, %v2038
  %v2082 = vadd.f32 %v1977, %v2058
  %v2083 = vadd.f32 %v1978, %v2078
  %2084 = vrot.lane.b32.xlu0 %v1264, 111
  %v2085 = vpop.permute.xlu0 %2084
  %2086 = vrot.lane.b32.xlu0 %v1265, 111
  %v2087 = vpop.permute.xlu0 %2086
  %2088 = vrot.lane.b32.xlu0 %v1266, 111
  %v2089 = vpop.permute.xlu0 %2088
  %2090 = vrot.lane.b32.xlu0 %v1267, 111
  %v2091 = vpop.permute.xlu0 %2090
  %v2092 = vsel %vm1133, %v2089, %v2091
  %v2093 = vsel %vm1133, %v2087, %v2089
  %v2094 = vsel %vm1133, %v2085, %v2087
  %v2095 = vsel %vm1133, %v2091, %v2085
  %v2096 = vmul.f32 %v2094, %v1141
  %v2097 = vmul.f32 %v2093, %v1142
  %v2098 = vmul.f32 %v2092, %v1143
  %v2099 = vmul.f32 %v2095, %v1144
  %s2100 = scalar_lea.vmem %s3, 64
  %v2101 = vld [vmem:[%s2100] sm:$0xff]
  %v2103 = vsel %vm1303, %v2101, 0
  %2105 = vmatpush.msra.mxu0 0.0
  %2106 = vmatpush.msra.mxu0 0.0
  %2107 = vmatpush.msra.mxu0 0.0
  %2108 = vmatpush.msra.mxu0 0.0
  %2109 = vmatpush.msra.mxu0 0.0
  %2110 = vmatpush.msra.mxu0 0.0
  %2111 = vmatpush.msra.mxu0 0.0
  %2112 = vmatpush.msra.mxu0 0.0
  %2113 = vmatpush.msra.mxu0 0.0
  %2114 = vmatpush.msra.mxu0 0.0
  %2115 = vmatpush.msra.mxu0 0.0
  %2116 = vmatpush.msra.mxu0 0.0
  %2117 = vmatpush.msra.mxu0 0.0
  %2118 = vmatpush.msra.mxu0 0.0
  %2119 = vmatpush.msra.mxu0 0.0
  %2120 = vmatpush.msra.mxu0 %v2096
  %2121 = vmatmul.f32.gmra.mxu0 %v2103
  %v2122 = vpop.f32.mrf.mxu0
  %v2123 = vadd.f32 0.0, %v2122
  %2124 = vdwg.mxu0
  %2125 = vmatpush.msra.mxu0 0.0
  %2126 = vmatpush.msra.mxu0 0.0
  %2127 = vmatpush.msra.mxu0 0.0
  %2128 = vmatpush.msra.mxu0 0.0
  %2129 = vmatpush.msra.mxu0 0.0
  %2130 = vmatpush.msra.mxu0 0.0
  %2131 = vmatpush.msra.mxu0 0.0
  %2132 = vmatpush.msra.mxu0 0.0
  %2133 = vmatpush.msra.mxu0 0.0
  %2134 = vmatpush.msra.mxu0 0.0
  %2135 = vmatpush.msra.mxu0 0.0
  %2136 = vmatpush.msra.mxu0 0.0
  %2137 = vmatpush.msra.mxu0 0.0
  %2138 = vmatpush.msra.mxu0 0.0
  %2139 = vmatpush.msra.mxu0 0.0
  %2140 = vmatpush.msra.mxu0 %v2097
  %2141 = vmatmul.f32.gmra.mxu0 %v2103
  %v2142 = vpop.f32.mrf.mxu0
  %v2143 = vadd.f32 0.0, %v2142
  %2144 = vdwg.mxu0
  %2145 = vmatpush.msra.mxu0 0.0
  %2146 = vmatpush.msra.mxu0 0.0
  %2147 = vmatpush.msra.mxu0 0.0
  %2148 = vmatpush.msra.mxu0 0.0
  %2149 = vmatpush.msra.mxu0 0.0
  %2150 = vmatpush.msra.mxu0 0.0
  %2151 = vmatpush.msra.mxu0 0.0
  %2152 = vmatpush.msra.mxu0 0.0
  %2153 = vmatpush.msra.mxu0 0.0
  %2154 = vmatpush.msra.mxu0 0.0
  %2155 = vmatpush.msra.mxu0 0.0
  %2156 = vmatpush.msra.mxu0 0.0
  %2157 = vmatpush.msra.mxu0 0.0
  %2158 = vmatpush.msra.mxu0 0.0
  %2159 = vmatpush.msra.mxu0 0.0
  %2160 = vmatpush.msra.mxu0 %v2098
  %2161 = vmatmul.f32.gmra.mxu0 %v2103
  %v2162 = vpop.f32.mrf.mxu0
  %v2163 = vadd.f32 0.0, %v2162
  %2164 = vdwg.mxu0
  %2165 = vmatpush.msra.mxu0 0.0
  %2166 = vmatpush.msra.mxu0 0.0
  %2167 = vmatpush.msra.mxu0 0.0
  %2168 = vmatpush.msra.mxu0 0.0
  %2169 = vmatpush.msra.mxu0 0.0
  %2170 = vmatpush.msra.mxu0 0.0
  %2171 = vmatpush.msra.mxu0 0.0
  %2172 = vmatpush.msra.mxu0 0.0
  %2173 = vmatpush.msra.mxu0 0.0
  %2174 = vmatpush.msra.mxu0 0.0
  %2175 = vmatpush.msra.mxu0 0.0
  %2176 = vmatpush.msra.mxu0 0.0
  %2177 = vmatpush.msra.mxu0 0.0
  %2178 = vmatpush.msra.mxu0 0.0
  %2179 = vmatpush.msra.mxu0 0.0
  %2180 = vmatpush.msra.mxu0 %v2099
  %2181 = vmatmul.f32.gmra.mxu0 %v2103
  %v2182 = vpop.f32.mrf.mxu0
  %v2183 = vadd.f32 0.0, %v2182
  %2184 = vdwg.mxu0
  %v2185 = vadd.f32 %v2080, %v2123
  %v2186 = vadd.f32 %v2081, %v2143
  %v2187 = vadd.f32 %v2082, %v2163
  %v2188 = vadd.f32 %v2083, %v2183
  %v2189 = vld [vmem:[%s4] sm:$0xff]
  %2191 = vset.pattern.permute.xlu0 0
  %2192 = vperm.xlu0 %2191, %v2189
  %v2193 = vpop.permute.xlu0 %2192
  %v2195 = vadd.f32 %v2185, %v2193
  %v2196 = vadd.f32 %v2186, %v2193
  %v2197 = vadd.f32 %v2187, %v2193
  %v2198 = vadd.f32 %v2188, %v2193
  %v2199 = vmax.f32 %v2195, 0.0
  %v2200 = vmax.f32 %v2196, 0.0
  %v2201 = vmax.f32 %v2197, 0.0
  %v2202 = vmax.f32 %v2198, 0.0
  %v2203 = vld [vmem:[%s8] sm:$0xff]
  %v2204 = vld [vmem:[%s8 + $0x8] sm:$0xff]
  %v2205 = vld [vmem:[%s8 + $0x10] sm:$0xff]
  %v2206 = vld [vmem:[%s8 + $0x18] sm:$0xff]
  %v2207 = vld [vmem:[%s8 + $0x20] sm:$0xff]
  %v2208 = vld [vmem:[%s8 + $0x28] sm:$0xff]
  %v2209 = vld [vmem:[%s8 + $0x30] sm:$0xff]
  %v2210 = vld [vmem:[%s8 + $0x38] sm:$0xff]
  %v2211 = vld [vmem:[%s8 + $0x40] sm:$0xff]
  %v2212 = vld [vmem:[%s8 + $0x48] sm:$0xff]
  %v2213 = vld [vmem:[%s8 + $0x50] sm:$0xff]
  %v2214 = vld [vmem:[%s8 + $0x58] sm:$0xff]
  %v2215 = vld [vmem:[%s8 + $0x60] sm:$0xff]
  %v2216 = vld [vmem:[%s8 + $0x68] sm:$0xff]
  %v2217 = vld [vmem:[%s8 + $0x70] sm:$0xff]
  %v2218 = vld [vmem:[%s8 + $0x78] sm:$0xff]
  %v2219 = vld [vmem:[%s8 + $0x80] sm:$0xff]
  %v2220 = vld [vmem:[%s8 + $0x88] sm:$0xff]
  %v2221 = vld [vmem:[%s8 + $0x90] sm:$0xff]
  %v2222 = vld [vmem:[%s8 + $0x98] sm:$0xff]
  %v2223 = vld [vmem:[%s8 + $0xa0] sm:$0xff]
  %v2224 = vld [vmem:[%s8 + $0xa8] sm:$0xff]
  %v2225 = vld [vmem:[%s8 + $0xb0] sm:$0xff]
  %v2226 = vld [vmem:[%s8 + $0xb8] sm:$0xff]
  %v2227 = vld [vmem:[%s8 + $0xc0] sm:$0xff]
  %v2228 = vld [vmem:[%s8 + $0xc8] sm:$0xff]
  %v2229 = vld [vmem:[%s8 + $0xd0] sm:$0xff]
  %v2230 = vld [vmem:[%s8 + $0xd8] sm:$0xff]
  %v2231 = vld [vmem:[%s8 + $0xe0] sm:$0xff]
  %v2232 = vld [vmem:[%s8 + $0xe8] sm:$0xff]
  %v2233 = vld [vmem:[%s8 + $0xf0] sm:$0xff]
  %v2234 = vld [vmem:[%s8 + $0xf8] sm:$0xff]
  %v2235 = vld [vmem:[%s8 + $0x100] sm:$0xff]
  %v2236 = vld [vmem:[%s8 + $0x108] sm:$0xff]
  %v2237 = vld [vmem:[%s8 + $0x110] sm:$0xff]
  %v2238 = vld [vmem:[%s8 + $0x118] sm:$0xff]
  %v2239 = vld [vmem:[%s8 + $0x120] sm:$0xff]
  %v2240 = vld [vmem:[%s8 + $0x128] sm:$0xff]
  %v2241 = vld [vmem:[%s8 + $0x130] sm:$0xff]
  %v2242 = vld [vmem:[%s8 + $0x138] sm:$0xff]
  %v2243 = vld [vmem:[%s8 + $0x140] sm:$0xff]
  %v2244 = vld [vmem:[%s8 + $0x148] sm:$0xff]
  %v2245 = vld [vmem:[%s8 + $0x150] sm:$0xff]
  %v2246 = vld [vmem:[%s8 + $0x158] sm:$0xff]
  %v2247 = vld [vmem:[%s8 + $0x160] sm:$0xff]
  %v2248 = vld [vmem:[%s8 + $0x168] sm:$0xff]
  %v2249 = vld [vmem:[%s8 + $0x170] sm:$0xff]
  %v2250 = vld [vmem:[%s8 + $0x178] sm:$0xff]
  %v2251 = vld [vmem:[%s8 + $0x180] sm:$0xff]
  %v2252 = vld [vmem:[%s8 + $0x188] sm:$0xff]
  %v2253 = vld [vmem:[%s8 + $0x190] sm:$0xff]
  %v2254 = vld [vmem:[%s8 + $0x198] sm:$0xff]
  %v2255 = vld [vmem:[%s8 + $0x1a0] sm:$0xff]
  %v2256 = vld [vmem:[%s8 + $0x1a8] sm:$0xff]
  %v2257 = vld [vmem:[%s8 + $0x1b0] sm:$0xff]
  %v2258 = vld [vmem:[%s8 + $0x1b8] sm:$0xff]
  %v2259 = vld [vmem:[%s8 + $0x1c0] sm:$0xff]
  %v2260 = vld [vmem:[%s8 + $0x1c8] sm:$0xff]
  %v2261 = vld [vmem:[%s8 + $0x1d0] sm:$0xff]
  %v2262 = vld [vmem:[%s8 + $0x1d8] sm:$0xff]
  %v2263 = vld [vmem:[%s8 + $0x1e0] sm:$0xff]
  %v2264 = vld [vmem:[%s8 + $0x1e8] sm:$0xff]
  %v2265 = vld [vmem:[%s8 + $0x1f0] sm:$0xff]
  %v2266 = vld [vmem:[%s8 + $0x1f8] sm:$0xff]
  %2267 = vmatpush.msra.mxu0 %v2218
  %2268 = vmatpush.msra.mxu0 %v2217
  %2269 = vmatpush.msra.mxu0 %v2216
  %2270 = vmatpush.msra.mxu0 %v2215
  %2271 = vmatpush.msra.mxu0 %v2214
  %2272 = vmatpush.msra.mxu0 %v2213
  %2273 = vmatpush.msra.mxu0 %v2212
  %2274 = vmatpush.msra.mxu0 %v2211
  %2275 = vmatpush.msra.mxu0 %v2210
  %2276 = vmatpush.msra.mxu0 %v2209
  %2277 = vmatpush.msra.mxu0 %v2208
  %2278 = vmatpush.msra.mxu0 %v2207
  %2279 = vmatpush.msra.mxu0 %v2206
  %2280 = vmatpush.msra.mxu0 %v2205
  %2281 = vmatpush.msra.mxu0 %v2204
  %2282 = vmatpush.msra.mxu0 %v2203
  %2283 = vmatmul.f32.gmra.mxu0 %v2199
  %v2284 = vpop.f32.mrf.mxu0
  %v2285 = vadd.f32 0.0, %v2284
  %2286 = vdwg.mxu0
  %2287 = vmatpush.msra.mxu0 %v2234
  %2288 = vmatpush.msra.mxu0 %v2233
  %2289 = vmatpush.msra.mxu0 %v2232
  %2290 = vmatpush.msra.mxu0 %v2231
  %2291 = vmatpush.msra.mxu0 %v2230
  %2292 = vmatpush.msra.mxu0 %v2229
  %2293 = vmatpush.msra.mxu0 %v2228
  %2294 = vmatpush.msra.mxu0 %v2227
  %2295 = vmatpush.msra.mxu0 %v2226
  %2296 = vmatpush.msra.mxu0 %v2225
  %2297 = vmatpush.msra.mxu0 %v2224
  %2298 = vmatpush.msra.mxu0 %v2223
  %2299 = vmatpush.msra.mxu0 %v2222
  %2300 = vmatpush.msra.mxu0 %v2221
  %2301 = vmatpush.msra.mxu0 %v2220
  %2302 = vmatpush.msra.mxu0 %v2219
  %2303 = vmatmul.f32.gmra.mxu0 %v2200
  %v2304 = vpop.f32.mrf.mxu0
  %v2305 = vadd.f32 %v2285, %v2304
  %2306 = vdwg.mxu0
  %2307 = vmatpush.msra.mxu0 %v2250
  %2308 = vmatpush.msra.mxu0 %v2249
  %2309 = vmatpush.msra.mxu0 %v2248
  %2310 = vmatpush.msra.mxu0 %v2247
  %2311 = vmatpush.msra.mxu0 %v2246
  %2312 = vmatpush.msra.mxu0 %v2245
  %2313 = vmatpush.msra.mxu0 %v2244
  %2314 = vmatpush.msra.mxu0 %v2243
  %2315 = vmatpush.msra.mxu0 %v2242
  %2316 = vmatpush.msra.mxu0 %v2241
  %2317 = vmatpush.msra.mxu0 %v2240
  %2318 = vmatpush.msra.mxu0 %v2239
  %2319 = vmatpush.msra.mxu0 %v2238
  %2320 = vmatpush.msra.mxu0 %v2237
  %2321 = vmatpush.msra.mxu0 %v2236
  %2322 = vmatpush.msra.mxu0 %v2235
  %2323 = vmatmul.f32.gmra.mxu0 %v2201
  %v2324 = vpop.f32.mrf.mxu0
  %v2325 = vadd.f32 %v2305, %v2324
  %2326 = vdwg.mxu0
  %2327 = vmatpush.msra.mxu0 %v2266
  %2328 = vmatpush.msra.mxu0 %v2265
  %2329 = vmatpush.msra.mxu0 %v2264
  %2330 = vmatpush.msra.mxu0 %v2263
  %2331 = vmatpush.msra.mxu0 %v2262
  %2332 = vmatpush.msra.mxu0 %v2261
  %2333 = vmatpush.msra.mxu0 %v2260
  %2334 = vmatpush.msra.mxu0 %v2259
  %2335 = vmatpush.msra.mxu0 %v2258
  %2336 = vmatpush.msra.mxu0 %v2257
  %2337 = vmatpush.msra.mxu0 %v2256
  %2338 = vmatpush.msra.mxu0 %v2255
  %2339 = vmatpush.msra.mxu0 %v2254
  %2340 = vmatpush.msra.mxu0 %v2253
  %2341 = vmatpush.msra.mxu0 %v2252
  %2342 = vmatpush.msra.mxu0 %v2251
  %2343 = vmatmul.f32.gmra.mxu0 %v2202
  %v2344 = vpop.f32.mrf.mxu0
  %v2345 = vadd.f32 %v2325, %v2344
  %2346 = vdwg.mxu0
  %v2347 = vld [vmem:[%s5] sm:$0xff]
  %v2348 = vld [vmem:[%s5 + $0x8] sm:$0x3]
  %v2349 = vld [vmem:[%s6] sm:$0xff]
  %v2350 = vld [vmem:[%s6 + $0x8] sm:$0x3]
  %2352 = vset.pattern.permute.xlu0 0
  %2353 = vperm.xlu0 %2352, %v2349
  %v2354 = vpop.permute.xlu0 %2353
  %2357 = vset.pattern.permute.xlu0 0
  %2358 = vperm.xlu0 %2357, %v2350
  %v2359 = vpop.permute.xlu0 %2358
  %v2362 = vsel %vm1303, %v2347, 0
  %v2365 = vsel %vm1303, %v2348, 0
  %2367 = vmatpush.msra.mxu0 0.0
  %2368 = vmatpush.msra.mxu0 0.0
  %2369 = vmatpush.msra.mxu0 0.0
  %2370 = vmatpush.msra.mxu0 0.0
  %2371 = vmatpush.msra.mxu0 0.0
  %2372 = vmatpush.msra.mxu0 0.0
  %2373 = vmatpush.msra.mxu0 0.0
  %2374 = vmatpush.msra.mxu0 0.0
  %2375 = vmatpush.msra.mxu0 0.0
  %2376 = vmatpush.msra.mxu0 0.0
  %2377 = vmatpush.msra.mxu0 0.0
  %2378 = vmatpush.msra.mxu0 0.0
  %2379 = vmatpush.msra.mxu0 0.0
  %2380 = vmatpush.msra.mxu0 0.0
  %2381 = vmatpush.msra.mxu0 0.0
  %2382 = vmatpush.msra.mxu0 %v2345
  %2383 = vmatmul.f32.gmra.mxu0 %v2362
  %v2384 = vpop.f32.mrf.mxu0
  %v2385 = vadd.f32 %v2354, %v2384
  %2386 = vmatmul.f32.gmra.mxu0 %v2365
  %v2387 = vpop.f32.mrf.mxu0
  %v2388 = vadd.f32 %v2359, %v2387
  %2389 = vdwg.mxu0
  %vm2390 = vcmask 15360
  %2391 = vst.msk [vmem:[%s9] sm:$0xff] %vm2390, %v2385
  %vm2392 = vcmask 9216
  %2393 = vst.msk [vmem:[%s9 + $0x8] sm:$0x3] %vm2392, %v2388
  // Predicated region
  $region38: #{mapped_model_forward.1} parent=0 // pred_check
    _
  $region39: #{mapped_model_forward.1} parent=0 // pred_check_branch
    %2395 = sbr.rel (0) target = $region41
  $region40: #{mapped_model_forward.1} parent=0 // pred_region
    _
  $region41: #{mapped_model_forward.1} parent=0 // pred_fallthru
    _
  // Predicated region
  $region42: #{mapped_model_forward.1} parent=0 // pred_check
    _
  $region43: #{mapped_model_forward.1} parent=0 // pred_check_branch
    %2397 = sbr.rel (0) target = $region45
  $region44: #{mapped_model_forward.1} parent=0 // pred_region
    _
  $region45: #{mapped_model_forward.1} parent=0 // pred_fallthru
    _

</llo_original>
